<compile_context>
chip_gen: v7x
topology: tpu7x:2x2x1
jax: 0.10.0
libtpu: 0.0.40
codegen_flags: <defaults>
</compile_context>

<pallas_src>
import functools

import jax
import jax.numpy as jnp
from jax import lax
from jax.experimental import pallas as pl
from jax.experimental.pallas import tpu as pltpu


_PAD_ROWS = 8  # 1 bias row (ones) + 7 zero rows -> keeps the MXU contraction
               # dim and the in-kernel sublane concat 8-aligned.


def _vq_kernel(x_ref, emba_ref, embt_ref, q_ref, idx_ref, lcol_ref, *,
               score_in_bf16=False):
    # x tile in transposed (lane-dense) layout; DMA'd in native dtype and
    # cast to f32 in-kernel (no wrapper-side upcast / extra HBM copy of x).
    xT = x_ref[0].astype(jnp.float32)                          # (D, thw)
    emba = emba_ref[...]                                       # (K, D+8) = [-E | 0.5||e||^2 | 0]
    embt = embt_ref[...]                                       # (D, K)  codebook^T (lookup)
    K = emba.shape[0]
    thw = xT.shape[1]

    # Fold the 0.5||e||^2 bias into the scoring matmul: append a [1;0;...;0]
    # block to x^T so   d = [-E | h | 0] @ [x; 1; 0] = 0.5||e||^2 - e.x,
    # which is argmin-equivalent to ||x - e||^2 (per-column ||x||^2 dropped).
    bias_rows = (lax.broadcasted_iota(jnp.int32, (_PAD_ROWS, thw), 0) == 0
                 ).astype(jnp.float32)                          # row0=1, rest 0
    xa = jnp.concatenate([xT, bias_rows], axis=0)               # (D+8, thw)
    if score_in_bf16:
        d = jnp.dot(emba.astype(jnp.bfloat16), xa.astype(jnp.bfloat16),
                    preferred_element_type=jnp.float32)          # (K, thw)
    else:
        d = jnp.dot(emba, xa, preferred_element_type=jnp.float32)

    # First-minimal-index argmin over the codebook axis (torch.argmin semantics).
    min_d = jnp.min(d, axis=0, keepdims=True)                    # (1, thw)
    iota_k = lax.broadcasted_iota(jnp.int32, d.shape, 0)         # (K, thw), reused below
    idx = jnp.min(jnp.where(d == min_d, iota_k, K), axis=0, keepdims=True)
    idx_ref[0] = idx                                             # (1, thw) int32

    # Gather-free lookup with the pre-transposed codebook (no per-tile vxpose).
    onehot = (iota_k == idx).astype(jnp.float32)                 # (K, thw)
    quantT = jnp.dot(embt, onehot, preferred_element_type=jnp.float32)  # (D, thw)
    q_ref[0] = quantT.astype(q_ref.dtype)

    # Loss partials from quantities already computed:
    #   ||q - x||^2 (per column) = ||x||^2 + 2 * min_d
    lcol_ref[0] = jnp.sum(xT * xT, axis=0, keepdims=True) + 2.0 * min_d


def _pick_thw(HW, cap):
    """Largest spatial tile <= cap: full extent if it fits, else a divisor of
    HW that is a multiple of 256 (preferred) or 128.  Returns 0 if none."""
    cap = max(128, min(cap, HW))
    if HW <= cap:
        return HW
    for mult in (256, 128):
        t = (cap // mult) * mult
        while t >= mult:
            if HW % t == 0:
                return t
            t -= mult
    return 0


def chameleon_vq_quantize(hidden_state, embedding_weight, beta=0.25,
                          tile_hw=1024, score_in_bf16=False):
    """hidden_state: (B, C, H, W) NCHW; embedding_weight: (K, C).

    tile_hw caps the spatial tile (suggest ~512 on v5e, 512-1024 on v6e; the
    VMEM-derived budget below already constrains v7x's 64 MiB per TC).
    """
    B, C, H, W = hidden_state.shape
    K, D = embedding_weight.shape
    assert D == C, "embed_dim must equal channel dim"
    HW = H * W
    N = B * HW
    x_bytes = jnp.dtype(hidden_state.dtype).itemsize
    out_dtype = hidden_state.dtype

    # Free reshape: NCHW is already x^T per batch -> (B, D, HW). No transpose,
    # no dtype upcast (the cast happens in-kernel after the DMA).
    x3 = hidden_state.reshape(B, D, HW)

    emb = embedding_weight.astype(jnp.float32)                    # (K, D)
    half_e_sq = 0.5 * jnp.sum(emb * emb, axis=1, keepdims=True)   # (K, 1)
    # [-E | 0.5||e||^2 | 0...0]: bias folded into the scoring matmul; the zero
    # columns keep the contraction dim 8-aligned.
    emb_aug = jnp.concatenate(
        [-emb, half_e_sq, jnp.zeros((K, _PAD_ROWS - 1), jnp.float32)], axis=1)
    embT = emb.T                                                  # (D, K)

    # ---- per-generation tile / VMEM sizing (leave ~25% headroom) ------------
    try:
        vmem_phys = int(pltpu.get_tpu_info().vmem_capacity_bytes)
        if not (16 << 20) <= vmem_phys <= (1 << 30):
            raise ValueError(vmem_phys)
    except Exception:
        vmem_phys = 64 << 20          # conservative: v7x per-TC physical VMEM
    vmem_budget = (vmem_phys * 3) // 4
    const_bytes = K * (D + _PAD_ROWS) * 4 + D * K * 4   # resident codebook copies
    per_col = (2 * D * x_bytes        # x^T tile, double-buffered, native dtype
               + 2 * D * 4            # quant^T tile, double-buffered
               + 4 * 4                # idx / lcol tiles
               + 4 * K * 4)           # ~4 live (K, thw) f32 temporaries
    thw_cap = min(tile_hw, max(128, (vmem_budget - 2 * const_bytes) // per_col))

    thw = _pick_thw(HW, thw_cap)
    hw_pad = HW
    if thw == 0:
        # No aligned divisor of HW: pad fallback (costs an extra HBM copy).
        thw = max(128, (thw_cap // 128) * 128)
        hw_pad = -(-HW // thw) * thw
        x3 = jnp.pad(x3, ((0, 0), (0, 0), (0, hw_pad - HW)))
    n_hw = hw_pad // thw

    # Expose >= 2 programs so both v7x TensorCores get work.
    if B * n_hw < 2 and hw_pad == HW and HW % 256 == 0:
        thw = HW // 2
        n_hw = 2

    grid = (B, n_hw)
    kernel = functools.partial(_vq_kernel, score_in_bf16=score_in_bf16)
    out_shape = (
        jax.ShapeDtypeStruct((B, D, hw_pad), out_dtype),    # quant^T
        jax.ShapeDtypeStruct((B, 1, hw_pad), jnp.int32),    # indices
        jax.ShapeDtypeStruct((B, 1, hw_pad), jnp.float32),  # loss column sums
    )

    def run(single_buffer_consts):
        # Constant-index operands only need a single VMEM buffer.
        const_kw = ({"pipeline_mode": pl.Buffered(1)}
                    if single_buffer_consts else {})
        grid_spec = pltpu.PrefetchScalarGridSpec(
            num_scalar_prefetch=0,
            grid=grid,
            in_specs=[
                pl.BlockSpec((1, D, thw), lambda b, j: (b, 0, j)),          # x^T
                pl.BlockSpec((K, D + _PAD_ROWS), lambda b, j: (0, 0), **const_kw),
                pl.BlockSpec((D, K), lambda b, j: (0, 0), **const_kw),
            ],
            out_specs=[
                pl.BlockSpec((1, D, thw), lambda b, j: (b, 0, j)),          # quant^T
                pl.BlockSpec((1, 1, thw), lambda b, j: (b, 0, j)),          # indices
                pl.BlockSpec((1, 1, thw), lambda b, j: (b, 0, j)),          # loss cols
            ],
        )
        return pl.pallas_call(
            kernel,
            out_shape=out_shape,
            grid_spec=grid_spec,
            compiler_params=pltpu.CompilerParams(
                dimension_semantics=("parallel", "parallel"),
                vmem_limit_bytes=int(vmem_budget)),
        )(x3, emb_aug, embT)

    try:
        q3, idx3, lcol = run(True)
    except Exception:
        # Fallback for jax builds where BlockSpec.pipeline_mode / Buffered(1)
        # is not supported at the top-level grid: default double-buffering.
        q3, idx3, lcol = run(False)

    if hw_pad != HW:                     # drop padded columns (pad path only)
        q3 = q3[:, :, :HW]
        idx3 = idx3[:, :, :HW]
        lcol = lcol[:, :, :HW]

    # loss = mean((q.detach()-x)^2) + beta*mean((q-x.detach())^2); both terms
    # equal the same MSE in the forward pass.
    mse = jnp.sum(lcol[:, 0, :]) / (N * D)
    loss = (1.0 + beta) * mse

    # Straight-through output == quantized values in the forward pass; the
    # (B, D, HW) result is already NCHW after a free reshape.
    # TODO(synk): detach / straight-through-estimator autograd semantics are
    # not representable in a forward-only kernel (would need a custom_vjp).
    quant_nchw = q3.reshape(B, C, H, W)
    min_encoding_indices = idx3.reshape(-1)
    return quant_nchw, loss, min_encoding_indices


def _reference(hidden_state, embedding_weight, beta=0.25):
    B, C, H, W = hidden_state.shape
    x = jnp.transpose(hidden_state, (0, 2, 3, 1)).reshape(-1, C).astype(jnp.float32)
    e = embedding_weight.astype(jnp.float32)
    d = (jnp.sum(x ** 2, axis=1, keepdims=True)
         + jnp.sum(e ** 2, axis=1)
         - 2.0 * x @ e.T)
    idx = jnp.argmin(d, axis=1)
    q = e[idx]
    mse = jnp.mean((q - x) ** 2)
    loss = mse + beta * mse
    q_nchw = jnp.transpose(q.reshape(B, H, W, C), (0, 3, 1, 2))
    return q_nchw, loss, idx


if __name__ == "__main__":
    # Synthetic config: num_embeddings=128, embed_dim=32 (small, deterministic)
    B, C, H, W = 2, 32, 16, 16
    K = 128
    beta = 0.25

    key = jax.random.PRNGKey(0)
    k_x, k_e = jax.random.split(key)
    hidden_state = jax.random.normal(k_x, (B, C, H, W), dtype=jnp.float32)
    # nn.Embedding default init ~ N(0, 1)
    embedding_weight = jax.random.normal(k_e, (K, C), dtype=jnp.float32)

    quant, loss, indices = chameleon_vq_quantize(
        hidden_state, embedding_weight, beta=beta)
    jax.block_until_ready((quant, loss, indices))

    q_ref, loss_ref, idx_ref = _reference(hidden_state, embedding_weight, beta)
    assert quant.shape == (B, C, H, W) and indices.shape == (B * H * W,)
    assert jnp.allclose(quant, q_ref, atol=1e-4, rtol=1e-4)
    # loss partials are colsum(x^2) + 2*min_d (re-associated vs the explicit
    # (q-x)^2 sum) -> allow a small relative drift (~1e-6 observed).
    assert jnp.allclose(loss, loss_ref, rtol=1e-4, atol=1e-6)
    assert bool(jnp.all(indices == idx_ref))

    print("KERNEL_OK")
</pallas_src>

<mosaic_0001>
module attributes {stable_mosaic.version = 11 : i64} {
  func.func @_vq_kernel(%arg0: i32, %arg1: i32, %arg2: memref<1x32x256xf32, #tpu.memory_space<vmem>>, %arg3: memref<128x40xf32, #tpu.memory_space<vmem>>, %arg4: memref<32x128xf32, #tpu.memory_space<vmem>>, %arg5: memref<1x32x256xf32, #tpu.memory_space<vmem>>, %arg6: memref<1x1x256xi32, #tpu.memory_space<vmem>>, %arg7: memref<1x1x256xf32, #tpu.memory_space<vmem>>) attributes {dimension_semantics = [#tpu.dimension_semantics<parallel>, #tpu.dimension_semantics<parallel>], iteration_bounds = array<i64: 2, 1>, scalar_prefetch = 0 : i64, scratch_operands = 0 : i64, tpu.core_type = #tpu.core_type<tc>, window_params = [{transform_indices = @transform_0, window_bounds = array<i64: 1, 32, 256>}, {pipeline_mode = #tpu.pipeline_mode<synchronous>, transform_indices = @transform_1, window_bounds = array<i64: 128, 40>}, {pipeline_mode = #tpu.pipeline_mode<synchronous>, transform_indices = @transform_2, window_bounds = array<i64: 32, 128>}, {transform_indices = @transform_3, window_bounds = array<i64: 1, 32, 256>}, {transform_indices = @transform_4, window_bounds = array<i64: 1, 1, 256>}, {transform_indices = @transform_5, window_bounds = array<i64: 1, 1, 256>}]} {
    %c0 = arith.constant 0 : index
    %c0_0 = arith.constant 0 : index
    %c0_1 = arith.constant 0 : index
    %0 = vector.load %arg2[%c0, %c0_0, %c0_1] : memref<1x32x256xf32, #tpu.memory_space<vmem>>, vector<1x32x256xf32>
    %1 = vector.shape_cast %0 : vector<1x32x256xf32> to vector<32x256xf32>
    %c0_2 = arith.constant 0 : index
    %c0_3 = arith.constant 0 : index
    %2 = vector.load %arg3[%c0_2, %c0_3] : memref<128x40xf32, #tpu.memory_space<vmem>>, vector<128x40xf32>
    %c0_4 = arith.constant 0 : index
    %c0_5 = arith.constant 0 : index
    %3 = vector.load %arg4[%c0_4, %c0_5] : memref<32x128xf32, #tpu.memory_space<vmem>>, vector<32x128xf32>
    %4 = tpu.iota {dimensions = array<i32: 0>} : vector<8x256xi32>
    %c0_i32 = arith.constant 0 : i32
    %5 = vector.broadcast %c0_i32 : i32 to vector<8x256xi32>
    %6 = arith.cmpi eq, %4, %5 : vector<8x256xi32>
    %7 = arith.extui %6 : vector<8x256xi1> to vector<8x256xi32>
    %8 = arith.sitofp %7 : vector<8x256xi32> to vector<8x256xf32>
    %9 = tpu.concatenate %1, %8 in 0 : vector<32x256xf32>, vector<8x256xf32> -> vector<40x256xf32>
    %cst = arith.constant dense<0.000000e+00> : vector<128x256xf32>
    %10 = tpu.matmul %2, %9, %cst {dimension_numbers = #tpu.dot_dimension_numbers<[1], [0], [0], [1], [0, 0, 1, 1], [], []>} : vector<128x40xf32>, vector<40x256xf32>, vector<128x256xf32> -> vector<128x256xf32>
    %cst_6 = arith.constant dense<0x7F800000> : vector<256xf32>
    %11 = vector.multi_reduction <minimumf>, %10, %cst_6 [0] : vector<128x256xf32> to vector<256xf32>
    %12 = vector.shape_cast %11 : vector<256xf32> to vector<1x256xf32>
    %13 = tpu.iota {dimensions = array<i32: 0>} : vector<128x256xi32>
    %14 = vector.broadcast %12 : vector<1x256xf32> to vector<128x256xf32>
    %15 = arith.cmpf oeq, %10, %14 : vector<128x256xf32>
    %c128_i32 = arith.constant 128 : i32
    %16 = vector.broadcast %c128_i32 : i32 to vector<128x256xi32>
    %17 = arith.select %15, %13, %16 : vector<128x256xi1>, vector<128x256xi32>
    %cst_7 = arith.constant dense<2147483647> : vector<256xi32>
    %18 = vector.multi_reduction <minsi>, %17, %cst_7 [0] : vector<128x256xi32> to vector<256xi32>
    %19 = vector.shape_cast %18 : vector<256xi32> to vector<1x256xi32>
    %c0_8 = arith.constant 0 : index
    %c0_9 = arith.constant 0 : index
    %c0_10 = arith.constant 0 : index
    %20 = vector.load %arg6[%c0_8, %c0_9, %c0_10] : memref<1x1x256xi32, #tpu.memory_space<vmem>>, vector<1x1x256xi32>
    %21 = vector.shape_cast %20 : vector<1x1x256xi32> to vector<1x256xi32>
    %22 = vector.shape_cast %19 : vector<1x256xi32> to vector<1x1x256xi32>
    tpu.vector_store %arg6[%c0_8, %c0_9, %c0_10], %22 {strides = array<i32>} : memref<1x1x256xi32, #tpu.memory_space<vmem>>, vector<1x1x256xi32>,
    %23 = vector.broadcast %19 : vector<1x256xi32> to vector<128x256xi32>
    %24 = arith.cmpi eq, %13, %23 : vector<128x256xi32>
    %25 = arith.extui %24 : vector<128x256xi1> to vector<128x256xi32>
    %26 = arith.sitofp %25 : vector<128x256xi32> to vector<128x256xf32>
    %cst_11 = arith.constant dense<0.000000e+00> : vector<32x256xf32>
    %27 = tpu.matmul %3, %26, %cst_11 {dimension_numbers = #tpu.dot_dimension_numbers<[1], [0], [0], [1], [0, 0, 1, 1], [], []>} : vector<32x128xf32>, vector<128x256xf32>, vector<32x256xf32> -> vector<32x256xf32>
    %c0_12 = arith.constant 0 : index
    %c0_13 = arith.constant 0 : index
    %c0_14 = arith.constant 0 : index
    %28 = vector.load %arg5[%c0_12, %c0_13, %c0_14] : memref<1x32x256xf32, #tpu.memory_space<vmem>>, vector<1x32x256xf32>
    %29 = vector.shape_cast %28 : vector<1x32x256xf32> to vector<32x256xf32>
    %30 = vector.shape_cast %27 : vector<32x256xf32> to vector<1x32x256xf32>
    tpu.vector_store %arg5[%c0_12, %c0_13, %c0_14], %30 {strides = array<i32>} : memref<1x32x256xf32, #tpu.memory_space<vmem>>, vector<1x32x256xf32>,
    %31 = arith.mulf %1, %1 : vector<32x256xf32>
    %cst_15 = arith.constant dense<0.000000e+00> : vector<256xf32>
    %32 = vector.multi_reduction <add>, %31, %cst_15 [0] : vector<32x256xf32> to vector<256xf32>
    %33 = vector.shape_cast %32 : vector<256xf32> to vector<1x256xf32>
    %cst_16 = arith.constant 2.000000e+00 : f32
    %34 = vector.broadcast %cst_16 : f32 to vector<1x256xf32>
    %35 = arith.mulf %34, %12 : vector<1x256xf32>
    %36 = arith.addf %33, %35 : vector<1x256xf32>
    %c0_17 = arith.constant 0 : index
    %c0_18 = arith.constant 0 : index
    %c0_19 = arith.constant 0 : index
    %37 = vector.load %arg7[%c0_17, %c0_18, %c0_19] : memref<1x1x256xf32, #tpu.memory_space<vmem>>, vector<1x1x256xf32>
    %38 = vector.shape_cast %37 : vector<1x1x256xf32> to vector<1x256xf32>
    %39 = vector.shape_cast %36 : vector<1x256xf32> to vector<1x1x256xf32>
    tpu.vector_store %arg7[%c0_17, %c0_18, %c0_19], %39 {strides = array<i32>} : memref<1x1x256xf32, #tpu.memory_space<vmem>>, vector<1x1x256xf32>,
    return
  }
  func.func @transform_0(%arg0: i32, %arg1: i32) -> (i32, i32, i32) {
    %c0_i32 = arith.constant 0 : i32
    %c0_i32_0 = arith.constant 0 : i32
    return %arg0, %c0_i32, %arg1 : i32, i32, i32
  }
  func.func @transform_1(%arg0: i32, %arg1: i32) -> (i32, i32) {
    %c0_i32 = arith.constant 0 : i32
    %c0_i32_0 = arith.constant 0 : i32
    %c0_i32_1 = arith.constant 0 : i32
    return %c0_i32, %c0_i32_0 : i32, i32
  }
  func.func @transform_2(%arg0: i32, %arg1: i32) -> (i32, i32) {
    %c0_i32 = arith.constant 0 : i32
    %c0_i32_0 = arith.constant 0 : i32
    %c0_i32_1 = arith.constant 0 : i32
    return %c0_i32, %c0_i32_0 : i32, i32
  }
  func.func @transform_3(%arg0: i32, %arg1: i32) -> (i32, i32, i32) {
    %c0_i32 = arith.constant 0 : i32
    %c0_i32_0 = arith.constant 0 : i32
    return %arg0, %c0_i32, %arg1 : i32, i32, i32
  }
  func.func @transform_4(%arg0: i32, %arg1: i32) -> (i32, i32, i32) {
    %c0_i32 = arith.constant 0 : i32
    %c0_i32_0 = arith.constant 0 : i32
    return %arg0, %c0_i32, %arg1 : i32, i32, i32
  }
  func.func @transform_5(%arg0: i32, %arg1: i32) -> (i32, i32, i32) {
    %c0_i32 = arith.constant 0 : i32
    %c0_i32_0 = arith.constant 0 : i32
    return %arg0, %c0_i32, %arg1 : i32, i32, i32
  }
}

module attributes {stable_mosaic.version = 11 : i64} {
  func.func @_vq_kernel(%arg0: i32, %arg1: i32, %arg2: memref<1x32x256xf32, #tpu.memory_space<vmem>>, %arg3: memref<128x40xf32, #tpu.memory_space<vmem>>, %arg4: memref<32x128xf32, #tpu.memory_space<vmem>>, %arg5: memref<1x32x256xf32, #tpu.memory_space<vmem>>, %arg6: memref<1x1x256xi32, #tpu.memory_space<vmem>>, %arg7: memref<1x1x256xf32, #tpu.memory_space<vmem>>) attributes {dimension_semantics = [#tpu.dimension_semantics<parallel>, #tpu.dimension_semantics<parallel>], iteration_bounds = array<i64: 2, 1>, scalar_prefetch = 0 : i64, scratch_operands = 0 : i64, tpu.core_type = #tpu.core_type<tc>, window_params = [{transform_indices = @transform_0, window_bounds = array<i64: 1, 32, 256>}, {pipeline_mode = #tpu.pipeline_mode<synchronous>, transform_indices = @transform_1, window_bounds = array<i64: 128, 40>}, {pipeline_mode = #tpu.pipeline_mode<synchronous>, transform_indices = @transform_2, window_bounds = array<i64: 32, 128>}, {transform_indices = @transform_3, window_bounds = array<i64: 1, 32, 256>}, {transform_indices = @transform_4, window_bounds = array<i64: 1, 1, 256>}, {transform_indices = @transform_5, window_bounds = array<i64: 1, 1, 256>}]} {
    %c0 = arith.constant 0 : index
    %c0_0 = arith.constant 0 : index
    %c0_1 = arith.constant 0 : index
    %0 = vector.load %arg2[%c0, %c0_0, %c0_1] : memref<1x32x256xf32, #tpu.memory_space<vmem>>, vector<1x32x256xf32>
    %1 = vector.shape_cast %0 : vector<1x32x256xf32> to vector<32x256xf32>
    %c0_2 = arith.constant 0 : index
    %c0_3 = arith.constant 0 : index
    %2 = vector.load %arg3[%c0_2, %c0_3] : memref<128x40xf32, #tpu.memory_space<vmem>>, vector<128x40xf32>
    %c0_4 = arith.constant 0 : index
    %c0_5 = arith.constant 0 : index
    %3 = vector.load %arg4[%c0_4, %c0_5] : memref<32x128xf32, #tpu.memory_space<vmem>>, vector<32x128xf32>
    %4 = tpu.iota {dimensions = array<i32: 0>} : vector<8x256xi32>
    %c0_i32 = arith.constant 0 : i32
    %5 = vector.broadcast %c0_i32 : i32 to vector<8x256xi32>
    %6 = arith.cmpi eq, %4, %5 : vector<8x256xi32>
    %7 = arith.extui %6 : vector<8x256xi1> to vector<8x256xi32>
    %8 = arith.sitofp %7 : vector<8x256xi32> to vector<8x256xf32>
    %9 = tpu.concatenate %1, %8 in 0 : vector<32x256xf32>, vector<8x256xf32> -> vector<40x256xf32>
    %cst = arith.constant dense<0.000000e+00> : vector<128x256xf32>
    %10 = tpu.matmul %2, %9, %cst {dimension_numbers = #tpu.dot_dimension_numbers<[1], [0], [0], [1], [0, 0, 1, 1], [], []>} : vector<128x40xf32>, vector<40x256xf32>, vector<128x256xf32> -> vector<128x256xf32>
    %cst_6 = arith.constant dense<0x7F800000> : vector<256xf32>
    %11 = vector.multi_reduction <minimumf>, %10, %cst_6 [0] : vector<128x256xf32> to vector<256xf32>
    %12 = vector.shape_cast %11 : vector<256xf32> to vector<1x256xf32>
    %13 = tpu.iota {dimensions = array<i32: 0>} : vector<128x256xi32>
    %14 = vector.broadcast %12 : vector<1x256xf32> to vector<128x256xf32>
    %15 = arith.cmpf oeq, %10, %14 : vector<128x256xf32>
    %c128_i32 = arith.constant 128 : i32
    %16 = vector.broadcast %c128_i32 : i32 to vector<128x256xi32>
    %17 = arith.select %15, %13, %16 : vector<128x256xi1>, vector<128x256xi32>
    %cst_7 = arith.constant dense<2147483647> : vector<256xi32>
    %18 = vector.multi_reduction <minsi>, %17, %cst_7 [0] : vector<128x256xi32> to vector<256xi32>
    %19 = vector.shape_cast %18 : vector<256xi32> to vector<1x256xi32>
    %c0_8 = arith.constant 0 : index
    %c0_9 = arith.constant 0 : index
    %c0_10 = arith.constant 0 : index
    %20 = vector.load %arg6[%c0_8, %c0_9, %c0_10] : memref<1x1x256xi32, #tpu.memory_space<vmem>>, vector<1x1x256xi32>
    %21 = vector.shape_cast %20 : vector<1x1x256xi32> to vector<1x256xi32>
    %22 = vector.shape_cast %19 : vector<1x256xi32> to vector<1x1x256xi32>
    tpu.vector_store %arg6[%c0_8, %c0_9, %c0_10], %22 {strides = array<i32>} : memref<1x1x256xi32, #tpu.memory_space<vmem>>, vector<1x1x256xi32>,
    %23 = vector.broadcast %19 : vector<1x256xi32> to vector<128x256xi32>
    %24 = arith.cmpi eq, %13, %23 : vector<128x256xi32>
    %25 = arith.extui %24 : vector<128x256xi1> to vector<128x256xi32>
    %26 = arith.sitofp %25 : vector<128x256xi32> to vector<128x256xf32>
    %cst_11 = arith.constant dense<0.000000e+00> : vector<32x256xf32>
    %27 = tpu.matmul %3, %26, %cst_11 {dimension_numbers = #tpu.dot_dimension_numbers<[1], [0], [0], [1], [0, 0, 1, 1], [], []>} : vector<32x128xf32>, vector<128x256xf32>, vector<32x256xf32> -> vector<32x256xf32>
    %c0_12 = arith.constant 0 : index
    %c0_13 = arith.constant 0 : index
    %c0_14 = arith.constant 0 : index
    %28 = vector.load %arg5[%c0_12, %c0_13, %c0_14] : memref<1x32x256xf32, #tpu.memory_space<vmem>>, vector<1x32x256xf32>
    %29 = vector.shape_cast %28 : vector<1x32x256xf32> to vector<32x256xf32>
    %30 = vector.shape_cast %27 : vector<32x256xf32> to vector<1x32x256xf32>
    tpu.vector_store %arg5[%c0_12, %c0_13, %c0_14], %30 {strides = array<i32>} : memref<1x32x256xf32, #tpu.memory_space<vmem>>, vector<1x32x256xf32>,
    %31 = arith.mulf %1, %1 : vector<32x256xf32>
    %cst_15 = arith.constant dense<0.000000e+00> : vector<256xf32>
    %32 = vector.multi_reduction <add>, %31, %cst_15 [0] : vector<32x256xf32> to vector<256xf32>
    %33 = vector.shape_cast %32 : vector<256xf32> to vector<1x256xf32>
    %cst_16 = arith.constant 2.000000e+00 : f32
    %34 = vector.broadcast %cst_16 : f32 to vector<1x256xf32>
    %35 = arith.mulf %34, %12 : vector<1x256xf32>
    %36 = arith.addf %33, %35 : vector<1x256xf32>
    %c0_17 = arith.constant 0 : index
    %c0_18 = arith.constant 0 : index
    %c0_19 = arith.constant 0 : index
    %37 = vector.load %arg7[%c0_17, %c0_18, %c0_19] : memref<1x1x256xf32, #tpu.memory_space<vmem>>, vector<1x1x256xf32>
    %38 = vector.shape_cast %37 : vector<1x1x256xf32> to vector<1x256xf32>
    %39 = vector.shape_cast %36 : vector<1x256xf32> to vector<1x1x256xf32>
    tpu.vector_store %arg7[%c0_17, %c0_18, %c0_19], %39 {strides = array<i32>} : memref<1x1x256xf32, #tpu.memory_space<vmem>>, vector<1x1x256xf32>,
    return
  }
  func.func @transform_0(%arg0: i32, %arg1: i32) -> (i32, i32, i32) {
    %c0_i32 = arith.constant 0 : i32
    %c0_i32_0 = arith.constant 0 : i32
    return %arg0, %c0_i32, %arg1 : i32, i32, i32
  }
  func.func @transform_1(%arg0: i32, %arg1: i32) -> (i32, i32) {
    %c0_i32 = arith.constant 0 : i32
    %c0_i32_0 = arith.constant 0 : i32
    %c0_i32_1 = arith.constant 0 : i32
    return %c0_i32, %c0_i32_0 : i32, i32
  }
  func.func @transform_2(%arg0: i32, %arg1: i32) -> (i32, i32) {
    %c0_i32 = arith.constant 0 : i32
    %c0_i32_0 = arith.constant 0 : i32
    %c0_i32_1 = arith.constant 0 : i32
    return %c0_i32, %c0_i32_0 : i32, i32
  }
  func.func @transform_3(%arg0: i32, %arg1: i32) -> (i32, i32, i32) {
    %c0_i32 = arith.constant 0 : i32
    %c0_i32_0 = arith.constant 0 : i32
    return %arg0, %c0_i32, %arg1 : i32, i32, i32
  }
  func.func @transform_4(%arg0: i32, %arg1: i32) -> (i32, i32, i32) {
    %c0_i32 = arith.constant 0 : i32
    %c0_i32_0 = arith.constant 0 : i32
    return %arg0, %c0_i32, %arg1 : i32, i32, i32
  }
  func.func @transform_5(%arg0: i32, %arg1: i32) -> (i32, i32, i32) {
    %c0_i32 = arith.constant 0 : i32
    %c0_i32_0 = arith.constant 0 : i32
    return %arg0, %c0_i32, %arg1 : i32, i32, i32
  }
}

</mosaic_0001>

<llo_original>
// kernel: tpu_custom_call.1
$region0: #{tpu_custom_call.1}
  #allocation0 [shape = 'u32[]', space=smem, size = 0x4, offset = 0x4, fixed_abs, tag = 'smem constant byte address 0x4 - core index']
  #allocation1 [shape = 'u32[144,128]{1,0:T(1,128)}', space=vmem, size = 0x12000, scoped, tag = 'internal scratch']
  %s0 = inlined_call_operand.vmem [shape: f32[2,32,256], index: 0, kind: input, shape index: {}]
  %s1 = inlined_call_operand.vmem [shape: f32[128,40], index: 1, kind: input, shape index: {}]
  %s2 = inlined_call_operand.vmem [shape: f32[32,128], index: 2, kind: input, shape index: {}]
  %s3 = inlined_call_operand.hbm [shape: f32[2,32,256], index: 3, kind: output, shape index: {0}]
  %s4 = inlined_call_operand.hbm [shape: s32[2,1,256], index: 4, kind: output, shape index: {1}]
  %s5 = inlined_call_operand.hbm [shape: f32[2,1,256], index: 5, kind: output, shape index: {2}]
  %6 = xla_tuple %s3, %s4, %s5
  %s7 = sld [smem:[#allocation0]]
  $region61: #{tpu_custom_call.1} parent=0
    _
  %s9 = ssub.s32 1, %s7
  %s10 = scalar_select 0, %s9, %s7
  $region1: #{tpu_custom_call.1} parent=0
    #allocation2 [shape = 'u8[65536]{0}', space=vmem, size = 0x10000, scoped, tag = 'output window, operand 0']
    #allocation3 [shape = 's32[2]{0}', space=sflag, size = 0x8, scoped, tag = 'scoped memory for tpu_custom_call.1']
    #allocation4 [shape = 'u8[2048]{0}', space=vmem, size = 0x800, scoped, tag = 'output window, operand 1']
    #allocation5 [shape = 's32[2]{0}', space=sflag, size = 0x8, scoped, tag = 'scoped memory for tpu_custom_call.1']
    #allocation6 [shape = 'u8[2048]{0}', space=vmem, size = 0x800, scoped, tag = 'output window, operand 2']
    %11 = vsyncpa [#allocation3], 0
    %s12 = scalar_lea.sflag [#allocation3], 1
    %13 = vsyncpa %s12, 0
    %14 = vsyncpa [#allocation5], 0
    %s15 = scalar_lea.sflag [#allocation5], 1
    %16 = vsyncpa %s15, 0
    loop: start=0, step=1, limit=4
    $region2: #{tpu_custom_call.1} parent=1 // loop_pre_header
      _
    $region3: #{tpu_custom_call.1} parent=1 // loop_header
      %s18 = sphi 0, %s22
      %p19 = scmp.ge.s32.totalorder %s18, 4
      %s25 = sphi 0, %s37
      %s26 = sphi 0, %s33
      %s27 = sphi 0, %s25
      %s28 = sphi 0, %s26
      %s29 = sphi 0, %s27
      %s30 = sphi 0, %s28
      %s42 = sphi 0, %s44
      %s45 = sphi 0, %s42
      %s46 = sphi 0, %s45
      %s62 = sphi 0, %s46
      %s66 = sphi 0, %s66
      %s68 = sphi 0, %s66
      %s69 = sphi 0, %s68
      %s83 = sphi 0, %s69
      %s87 = sphi 0, %s87
      %s89 = sphi 0, %s87
      %s90 = sphi 0, %s89
      %s104 = sphi 0, %s90
      %s112 = sphi 0, %s114
      %s115 = sphi 0, %s112
      %s116 = sphi 0, %s115
      %s132 = sphi 0, %s116
      %s140 = sphi 0, %s142
      %s143 = sphi 0, %s140
      %s144 = sphi 0, %s143
      %s160 = sphi 0, %s144
      %s168 = sphi 0, %s170
      %s171 = sphi 0, %s168
      %s172 = sphi 0, %s171
      %s188 = sphi 0, %s172
    $region4: #{tpu_custom_call.1} parent=1 // loop_header_branch
      %21 = sbr.rel (%p19) target = $region8
    $region5: #{tpu_custom_call.1} parent=1 // loop_body
      %s23 = ssub.s32 %s18, 1
      %s24 = ssub.s32 %s18, 2
      %s31 = sadd.s32 1, %s26
      %p32 = scmp.ge.s32.totalorder %s31, 1
      %s33 = scalar_select %p32, 0, %s31
      %s34 = sadd.s32 1, %s25
      %s35 = scalar_select %p32, %s34, %s25
      %p36 = scmp.ge.s32.totalorder %s35, 2
      %s37 = scalar_select %p36, 0, %s35
      %s38 = ssub.s32 %s25, %s37
      %s39 = ssub.s32 %s26, %s33
      %s40 = sor.u32 %s38, %s39
      %p41 = scmp.eq.s32.totalorder %s40, 0
      %s43 = sadd.s32 %s42, 1
      %s44 = scalar_select %p41, %s42, %s43
      %p47 = pneg %p41
      %p48 = scmp.eq.s32.totalorder %s18, 1
      %p49 = por %p47, %p48
      %p50 = scmp.ne.s32.totalorder %s42, %s45
      %p51 = scmp.eq.s32.totalorder %s18, 0
      %p52 = por %p50, %p51
      %p53 = scmp.ne.s32.totalorder %s42, %s45
      %p54 = scmp.eq.s32.totalorder %s23, 1
      %p55 = por %p53, %p54
      %p56 = scmp.ne.s32.totalorder %s45, %s46
      %p57 = scmp.eq.s32.totalorder %s23, 0
      %p58 = por %p56, %p57
      %p59 = scmp.ne.s32.totalorder %s45, %s46
      %p60 = scmp.eq.s32.totalorder %s24, 1
      %p61 = por %p59, %p60
      %p63 = scmp.ne.s32.totalorder %s46, %s62
      %p64 = scmp.eq.s32.totalorder %s24, 0
      %p65 = por %p63, %p64
      %s67 = sadd.s32 %s66, 1
      %p70 = scmp.eq.s32.totalorder %s18, 1
      %p71 = scmp.ne.s32.totalorder %s66, %s68
      %p72 = scmp.eq.s32.totalorder %s18, 0
      %p73 = por %p71, %p72
      %p74 = scmp.ne.s32.totalorder %s66, %s68
      %p75 = scmp.eq.s32.totalorder %s23, 1
      %p76 = por %p74, %p75
      %p77 = scmp.ne.s32.totalorder %s68, %s69
      %p78 = scmp.eq.s32.totalorder %s23, 0
      %p79 = por %p77, %p78
      %p80 = scmp.ne.s32.totalorder %s68, %s69
      %p81 = scmp.eq.s32.totalorder %s24, 1
      %p82 = por %p80, %p81
      %p84 = scmp.ne.s32.totalorder %s69, %s83
      %p85 = scmp.eq.s32.totalorder %s24, 0
      %p86 = por %p84, %p85
      %s88 = sadd.s32 %s87, 1
      %p91 = scmp.eq.s32.totalorder %s18, 1
      %p92 = scmp.ne.s32.totalorder %s87, %s89
      %p93 = scmp.eq.s32.totalorder %s18, 0
      %p94 = por %p92, %p93
      %p95 = scmp.ne.s32.totalorder %s87, %s89
      %p96 = scmp.eq.s32.totalorder %s23, 1
      %p97 = por %p95, %p96
      %p98 = scmp.ne.s32.totalorder %s89, %s90
      %p99 = scmp.eq.s32.totalorder %s23, 0
      %p100 = por %p98, %p99
      %p101 = scmp.ne.s32.totalorder %s89, %s90
      %p102 = scmp.eq.s32.totalorder %s24, 1
      %p103 = por %p101, %p102
      %p105 = scmp.ne.s32.totalorder %s90, %s104
      %p106 = scmp.eq.s32.totalorder %s24, 0
      %p107 = por %p105, %p106
      %s108 = ssub.s32 %s25, %s37
      %s109 = ssub.s32 %s26, %s33
      %s110 = sor.u32 %s108, %s109
      %p111 = scmp.eq.s32.totalorder %s110, 0
      %s113 = sadd.s32 %s112, 1
      %s114 = scalar_select %p111, %s112, %s113
      %p117 = pneg %p111
      %p118 = scmp.eq.s32.totalorder %s18, 1
      %p119 = por %p117, %p118
      %p120 = scmp.ne.s32.totalorder %s112, %s115
      %p121 = scmp.eq.s32.totalorder %s18, 0
      %p122 = por %p120, %p121
      %p123 = scmp.ne.s32.totalorder %s112, %s115
      %p124 = scmp.eq.s32.totalorder %s23, 1
      %p125 = por %p123, %p124
      %p126 = scmp.ne.s32.totalorder %s115, %s116
      %p127 = scmp.eq.s32.totalorder %s23, 0
      %p128 = por %p126, %p127
      %p129 = scmp.ne.s32.totalorder %s115, %s116
      %p130 = scmp.eq.s32.totalorder %s24, 1
      %p131 = por %p129, %p130
      %p133 = scmp.ne.s32.totalorder %s116, %s132
      %p134 = scmp.eq.s32.totalorder %s24, 0
      %p135 = por %p133, %p134
      %s136 = ssub.s32 %s25, %s37
      %s137 = ssub.s32 %s26, %s33
      %s138 = sor.u32 %s136, %s137
      %p139 = scmp.eq.s32.totalorder %s138, 0
      %s141 = sadd.s32 %s140, 1
      %s142 = scalar_select %p139, %s140, %s141
      %p145 = pneg %p139
      %p146 = scmp.eq.s32.totalorder %s18, 1
      %p147 = por %p145, %p146
      %p148 = scmp.ne.s32.totalorder %s140, %s143
      %p149 = scmp.eq.s32.totalorder %s18, 0
      %p150 = por %p148, %p149
      %p151 = scmp.ne.s32.totalorder %s140, %s143
      %p152 = scmp.eq.s32.totalorder %s23, 1
      %p153 = por %p151, %p152
      %p154 = scmp.ne.s32.totalorder %s143, %s144
      %p155 = scmp.eq.s32.totalorder %s23, 0
      %p156 = por %p154, %p155
      %p157 = scmp.ne.s32.totalorder %s143, %s144
      %p158 = scmp.eq.s32.totalorder %s24, 1
      %p159 = por %p157, %p158
      %p161 = scmp.ne.s32.totalorder %s144, %s160
      %p162 = scmp.eq.s32.totalorder %s24, 0
      %p163 = por %p161, %p162
      %s164 = ssub.s32 %s25, %s37
      %s165 = ssub.s32 %s26, %s33
      %s166 = sor.u32 %s164, %s165
      %p167 = scmp.eq.s32.totalorder %s166, 0
      %s169 = sadd.s32 %s168, 1
      %s170 = scalar_select %p167, %s168, %s169
      %p173 = pneg %p167
      %p174 = scmp.eq.s32.totalorder %s18, 1
      %p175 = por %p173, %p174
      %p176 = scmp.ne.s32.totalorder %s168, %s171
      %p177 = scmp.eq.s32.totalorder %s18, 0
      %p178 = por %p176, %p177
      %p179 = scmp.ne.s32.totalorder %s168, %s171
      %p180 = scmp.eq.s32.totalorder %s23, 1
      %p181 = por %p179, %p180
      %p182 = scmp.ne.s32.totalorder %s171, %s172
      %p183 = scmp.eq.s32.totalorder %s23, 0
      %p184 = por %p182, %p183
      %p185 = scmp.ne.s32.totalorder %s171, %s172
      %p186 = scmp.eq.s32.totalorder %s24, 1
      %p187 = por %p185, %p186
      %p189 = scmp.ne.s32.totalorder %s172, %s188
      %p190 = scmp.eq.s32.totalorder %s24, 0
      %p191 = por %p189, %p190
      %p192 = scmp.le.s32.totalorder 1, %s18
      %p193 = scmp.lt.s32.totalorder %s18, 3
      %p194 = pnand %p192, %p193
      %p195 = pneg %p194
      // Predicated region
      $region9: #{tpu_custom_call.1} parent=5 // pred_check
        _
      $region10: #{tpu_custom_call.1} parent=5 // pred_check_branch
        %197 = sbr.rel (%p194) target = $region12
      $region11: #{tpu_custom_call.1} parent=5 // pred_region
        %s198 = ssub.s32 %s18, 1
        // Predicated region
        $region13: #{tpu_custom_call.1} parent=11 // pred_check
          %p199 = pneg %p79
        $region14: #{tpu_custom_call.1} parent=11 // pred_check_branch
          %201 = sbr.rel (%p199) target = $region16
        $region15: #{tpu_custom_call.1} parent=11 // pred_region
          _
        $region16: #{tpu_custom_call.1} parent=11 // pred_fallthru
          _
        // Predicated region
        $region17: #{tpu_custom_call.1} parent=11 // pred_check
          %p202 = pneg %p100
        $region18: #{tpu_custom_call.1} parent=11 // pred_check_branch
          %204 = sbr.rel (%p202) target = $region20
        $region19: #{tpu_custom_call.1} parent=11 // pred_region
          _
        $region20: #{tpu_custom_call.1} parent=11 // pred_fallthru
          _
      $region12: #{tpu_custom_call.1} parent=5 // pred_fallthru
        _
      %p205 = scmp.lt.s32.totalorder %s18, 2
      // Predicated region
      $region21: #{tpu_custom_call.1} parent=5 // pred_check
        %p206 = pneg %p205
      $region22: #{tpu_custom_call.1} parent=5 // pred_check_branch
        %208 = sbr.rel (%p206) target = $region24
      $region23: #{tpu_custom_call.1} parent=5 // pred_region
        // Predicated region
        $region25: #{tpu_custom_call.1} parent=23 // pred_check
          %p209 = pneg %p52
        $region26: #{tpu_custom_call.1} parent=23 // pred_check_branch
          %211 = sbr.rel (%p209) target = $region28
        $region27: #{tpu_custom_call.1} parent=23 // pred_region
          %s212 = smul.u32 2, %s26
          %p213 = scmp.lt.s32.totalorder %s25, 1
          %s214 = scalar_select %p213, %s25, 1
          %p215 = scmp.lt.s32.totalorder %s212, 1
          %s216 = scalar_select %p215, %s212, 1
          %s217 = smul.addr %s214, 8
          %s218 = sadd.s32 %s216, %s217
          %s219 = smul.addr %s218, 8
          %s220 = scalar_lea.vmem %s0, %s219
          %s221 = smul.u32 2, %s26
        $region28: #{tpu_custom_call.1} parent=23 // pred_fallthru
          _
      $region24: #{tpu_custom_call.1} parent=5 // pred_fallthru
        _
      %p222 = scmp.le.s32.totalorder 1, %s18
      %p223 = scmp.lt.s32.totalorder %s18, 3
      %p224 = pnand %p222, %p223
      %p225 = pneg %p224
      // Predicated region
      $region29: #{tpu_custom_call.1} parent=5 // pred_check
        _
      $region30: #{tpu_custom_call.1} parent=5 // pred_check_branch
        %227 = sbr.rel (%p224) target = $region32
      $region31: #{tpu_custom_call.1} parent=5 // pred_region
        %s228 = ssub.s32 %s18, 1
        %s229 = smul.u32 2, %s28
        %p230 = scmp.lt.s32.totalorder %s27, 1
        %s231 = scalar_select %p230, %s27, 1
        %p232 = scmp.lt.s32.totalorder %s229, 1
        %s233 = scalar_select %p232, %s229, 1
        %s234 = smul.addr %s231, 8
        %s235 = sadd.s32 %s233, %s234
        %s236 = smul.addr %s235, 8
        %s237 = scalar_lea.vmem %s0, %s236
        %p238 = pneg %p58
        %p239 = pneg %p55
        %p240 = pneg %p79
        %p241 = pneg %p76
        %p242 = pneg %p100
        %p243 = pneg %p97
        %p244 = pneg %p128
        %p245 = pneg %p125
        %s246 = sand.u32 %s115, 1
        %s247 = scalar_lea.sflag [#allocation3], %s246
        %s248 = sand.u32 %s115, 1
        %s249 = smul.addr %s248, 64
        %s250 = scalar_lea.vmem [#allocation2], %s249
        %p251 = pneg %p156
        %p252 = pneg %p153
        %s253 = sand.u32 %s23, 1
        %s254 = scalar_lea.sflag [#allocation5], %s253
        %s255 = sand.u32 %s143, 1
        %s256 = smul.addr %s255, 2
        %s257 = scalar_lea.vmem [#allocation4], %s256
        %p258 = pneg %p184
        %p259 = pneg %p181
        %s260 = sand.u32 %s23, 1
        %s261 = scalar_lea.sflag [#allocation5], %s260
        %s262 = sand.u32 %s171, 1
        %s263 = smul.addr %s262, 2
        %s264 = scalar_lea.vmem [#allocation6], %s263
        %s265 = smul.u32 2, %s28
        %p266 = scmp.lt.s32.totalorder %s27, 1
        %s267 = scalar_select %p266, %s27, 1
        %p268 = scmp.lt.s32.totalorder %s265, 1
        %s269 = scalar_select %p268, %s265, 1
        %s270 = smul.addr %s267, 8
        %s271 = sadd.s32 %s269, %s270
        %s272 = smul.addr %s271, 8
        %s273 = scalar_lea.vmem %s0, %s272
        %s274 = smul.u32 2, %s28
        %s275 = smul.u32 2, %s28
        %s276 = smul.u32 2, %s28
        %s277 = smul.u32 2, %s28
        %v278 = vld [vmem:[%s273] sm:$0xff]
        %v279 = vld [vmem:[%s273 + $0x8] sm:$0xff]
        %v280 = vld [vmem:[%s273 + $0x10] sm:$0xff]
        %v281 = vld [vmem:[%s273 + $0x18] sm:$0xff]
        %v282 = vld [vmem:[%s273 + $0x20] sm:$0xff]
        %v283 = vld [vmem:[%s273 + $0x28] sm:$0xff]
        %v284 = vld [vmem:[%s273 + $0x30] sm:$0xff]
        %v285 = vld [vmem:[%s273 + $0x38] sm:$0xff]
        %v286 = vld [vmem:[%s1] sm:$0xff]
        %v287 = vld [vmem:[%s1 + $0x8] sm:$0xff]
        %v288 = vld [vmem:[%s1 + $0x10] sm:$0xff]
        %v289 = vld [vmem:[%s1 + $0x18] sm:$0xff]
        %v290 = vld [vmem:[%s1 + $0x20] sm:$0xff]
        %v291 = vld [vmem:[%s1 + $0x28] sm:$0xff]
        %v292 = vld [vmem:[%s1 + $0x30] sm:$0xff]
        %v293 = vld [vmem:[%s1 + $0x38] sm:$0xff]
        %v294 = vld [vmem:[%s1 + $0x40] sm:$0xff]
        %v295 = vld [vmem:[%s1 + $0x48] sm:$0xff]
        %v296 = vld [vmem:[%s1 + $0x50] sm:$0xff]
        %v297 = vld [vmem:[%s1 + $0x58] sm:$0xff]
        %v298 = vld [vmem:[%s1 + $0x60] sm:$0xff]
        %v299 = vld [vmem:[%s1 + $0x68] sm:$0xff]
        %v300 = vld [vmem:[%s1 + $0x70] sm:$0xff]
        %v301 = vld [vmem:[%s1 + $0x78] sm:$0xff]
        %v302 = vld [vmem:[%s2] sm:$0xff]
        %v303 = vld [vmem:[%s2 + $0x8] sm:$0xff]
        %v304 = vld [vmem:[%s2 + $0x10] sm:$0xff]
        %v305 = vld [vmem:[%s2 + $0x18] sm:$0xff]
        %v306 = vlaneseq
        %v307 = vshrl.u32 %v306, 7
        %vm308 = vcmp.eq.s32.totalorder %v307, 0
        %v309 = vsel %vm308, 1, 0
        %v310 = vcvt.s32.f32 %v309
        %vm311 = vcmask 326656
        %v313 = vsel %vm311, %v286, 0
        %v316 = vsel %vm311, %v287, 0
        %v319 = vsel %vm311, %v288, 0
        %v322 = vsel %vm311, %v289, 0
        %v325 = vsel %vm311, %v290, 0
        %v328 = vsel %vm311, %v291, 0
        %v331 = vsel %vm311, %v292, 0
        %v334 = vsel %vm311, %v293, 0
        %v337 = vsel %vm311, %v294, 0
        %v340 = vsel %vm311, %v295, 0
        %v343 = vsel %vm311, %v296, 0
        %v346 = vsel %vm311, %v297, 0
        %v349 = vsel %vm311, %v298, 0
        %v352 = vsel %vm311, %v299, 0
        %v355 = vsel %vm311, %v300, 0
        %v358 = vsel %vm311, %v301, 0
        %360 = vmatprep.subr.mxu0 %v279
        %361 = vmatpush1.msra.mxu0 %v278
        %362 = vmatprep.subr.mxu0 %v281
        %363 = vmatpush1.msra.mxu0 %v280
        %364 = vmatprep.subr.mxu0 %v283
        %365 = vmatpush1.msra.mxu0 %v282
        %366 = vmatprep.subr.mxu0 %v285
        %367 = vmatpush1.msra.mxu0 %v284
        %368 = vmatprep.subr.mxu0 %v310
        %369 = vmatpush1.msra.mxu0 %v310
        %370 = vmatprep.subr.mxu0 0.0
        %371 = vmatpush1.msra.mxu0 0.0
        %372 = vmatprep.subr.mxu0 0.0
        %373 = vmatpush1.msra.mxu0 0.0
        %374 = vmatprep.subr.mxu0 0.0
        %375 = vmatpush1.msra.mxu0 0.0
        %376 = vmatprep.subr.mxu0 0.0
        %377 = vmatpush1.msra.mxu0 0.0
        %378 = vmatprep.subr.mxu0 0.0
        %379 = vmatpush1.msra.mxu0 0.0
        %380 = vmatprep.subr.mxu0 0.0
        %381 = vmatpush1.msra.mxu0 0.0
        %382 = vmatprep.subr.mxu0 0.0
        %383 = vmatpush1.msra.mxu0 0.0
        %384 = vmatprep.subr.mxu0 0.0
        %385 = vmatpush1.msra.mxu0 0.0
        %386 = vmatprep.subr.mxu0 0.0
        %387 = vmatpush1.msra.mxu0 0.0
        %388 = vmatprep.subr.mxu0 0.0
        %389 = vmatpush1.msra.mxu0 0.0
        %390 = vmatprep.subr.mxu0 0.0
        %391 = vmatpush1.msra.mxu0 0.0
        %392 = vmatprep.subr.mxu0 0.0
        %393 = vmatpush1.msra.mxu0 0.0
        %394 = vmatprep.subr.mxu0 0.0
        %395 = vmatpush1.msra.mxu0 0.0
        %396 = vmatprep.subr.mxu0 0.0
        %397 = vmatpush1.msra.mxu0 0.0
        %398 = vmatprep.subr.mxu0 0.0
        %399 = vmatpush1.msra.mxu0 0.0
        %400 = vmatprep.subr.mxu0 0.0
        %401 = vmatpush1.msra.mxu0 0.0
        %402 = vmatprep.subr.mxu0 0.0
        %403 = vmatpush1.msra.mxu0 0.0
        %404 = vmatprep.subr.mxu0 0.0
        %405 = vmatpush1.msra.mxu0 0.0
        %406 = vmatprep.subr.mxu0 0.0
        %407 = vmatpush1.msra.mxu0 0.0
        %408 = vmatprep.subr.mxu0 0.0
        %409 = vmatpush1.msra.mxu0 0.0
        %410 = vmatprep.subr.mxu0 0.0
        %411 = vmatpush1.msra.mxu0 0.0
        %412 = vmatprep.subr.mxu0 0.0
        %413 = vmatpush1.msra.mxu0 0.0
        %414 = vmatprep.subr.mxu0 0.0
        %415 = vmatpush1.msra.mxu0 0.0
        %416 = vmatprep.subr.mxu0 0.0
        %417 = vmatpush1.msra.mxu0 0.0
        %418 = vmatprep.subr.mxu0 0.0
        %419 = vmatpush1.msra.mxu0 0.0
        %420 = vmatprep.subr.mxu0 0.0
        %421 = vmatpush1.msra.mxu0 0.0
        %422 = vmatprep.subr.mxu0 0.0
        %423 = vmatpush1.msra.mxu0 0.0
        %424 = vmatprep.mubr.f32.mxu0 0.0
        %425 = vmatmul.mubr.f32.gmra.mrb[0].mxu0 %v313
        %v426 = vpop.f32.mrb[0].mxu0
        %v427 = vadd.f32 0.0, %v426
        %v428 = vpop.f32.mrb[0].mxu0
        %v429 = vadd.f32 0.0, %v428
        %430 = vmatprep.mubr.f32.mxu0 0.0
        %431 = vmatmul.mubr.f32.gmra.mrb[0].mxu0 %v316
        %v432 = vpop.f32.mrb[0].mxu0
        %v433 = vadd.f32 0.0, %v432
        %v434 = vpop.f32.mrb[0].mxu0
        %v435 = vadd.f32 0.0, %v434
        %436 = vmatprep.mubr.f32.mxu0 0.0
        %437 = vmatmul.mubr.f32.gmra.mrb[0].mxu0 %v319
        %v438 = vpop.f32.mrb[0].mxu0
        %v439 = vadd.f32 0.0, %v438
        %v440 = vpop.f32.mrb[0].mxu0
        %v441 = vadd.f32 0.0, %v440
        %442 = vmatprep.mubr.f32.mxu0 0.0
        %443 = vmatmul.mubr.f32.gmra.mrb[0].mxu0 %v322
        %v444 = vpop.f32.mrb[0].mxu0
        %v445 = vadd.f32 0.0, %v444
        %v446 = vpop.f32.mrb[0].mxu0
        %v447 = vadd.f32 0.0, %v446
        %448 = vmatprep.mubr.f32.mxu0 0.0
        %449 = vmatmul.mubr.f32.gmra.mrb[0].mxu0 %v325
        %v450 = vpop.f32.mrb[0].mxu0
        %v451 = vadd.f32 0.0, %v450
        %v452 = vpop.f32.mrb[0].mxu0
        %v453 = vadd.f32 0.0, %v452
        %454 = vmatprep.mubr.f32.mxu0 0.0
        %455 = vmatmul.mubr.f32.gmra.mrb[0].mxu0 %v328
        %v456 = vpop.f32.mrb[0].mxu0
        %v457 = vadd.f32 0.0, %v456
        %v458 = vpop.f32.mrb[0].mxu0
        %v459 = vadd.f32 0.0, %v458
        %460 = vmatprep.mubr.f32.mxu0 0.0
        %461 = vmatmul.mubr.f32.gmra.mrb[0].mxu0 %v331
        %v462 = vpop.f32.mrb[0].mxu0
        %v463 = vadd.f32 0.0, %v462
        %v464 = vpop.f32.mrb[0].mxu0
        %v465 = vadd.f32 0.0, %v464
        %466 = vmatprep.mubr.f32.mxu0 0.0
        %467 = vmatmul.mubr.f32.gmra.mrb[0].mxu0 %v334
        %v468 = vpop.f32.mrb[0].mxu0
        %v469 = vadd.f32 0.0, %v468
        %v470 = vpop.f32.mrb[0].mxu0
        %v471 = vadd.f32 0.0, %v470
        %472 = vmatprep.mubr.f32.mxu0 0.0
        %473 = vmatmul.mubr.f32.gmra.mrb[0].mxu0 %v337
        %v474 = vpop.f32.mrb[0].mxu0
        %v475 = vadd.f32 0.0, %v474
        %v476 = vpop.f32.mrb[0].mxu0
        %v477 = vadd.f32 0.0, %v476
        %478 = vmatprep.mubr.f32.mxu0 0.0
        %479 = vmatmul.mubr.f32.gmra.mrb[0].mxu0 %v340
        %v480 = vpop.f32.mrb[0].mxu0
        %v481 = vadd.f32 0.0, %v480
        %v482 = vpop.f32.mrb[0].mxu0
        %v483 = vadd.f32 0.0, %v482
        %484 = vmatprep.mubr.f32.mxu0 0.0
        %485 = vmatmul.mubr.f32.gmra.mrb[0].mxu0 %v343
        %v486 = vpop.f32.mrb[0].mxu0
        %v487 = vadd.f32 0.0, %v486
        %v488 = vpop.f32.mrb[0].mxu0
        %v489 = vadd.f32 0.0, %v488
        %490 = vmatprep.mubr.f32.mxu0 0.0
        %491 = vmatmul.mubr.f32.gmra.mrb[0].mxu0 %v346
        %v492 = vpop.f32.mrb[0].mxu0
        %v493 = vadd.f32 0.0, %v492
        %v494 = vpop.f32.mrb[0].mxu0
        %v495 = vadd.f32 0.0, %v494
        %496 = vmatprep.mubr.f32.mxu0 0.0
        %497 = vmatmul.mubr.f32.gmra.mrb[0].mxu0 %v349
        %v498 = vpop.f32.mrb[0].mxu0
        %v499 = vadd.f32 0.0, %v498
        %v500 = vpop.f32.mrb[0].mxu0
        %v501 = vadd.f32 0.0, %v500
        %502 = vmatprep.mubr.f32.mxu0 0.0
        %503 = vmatmul.mubr.f32.gmra.mrb[0].mxu0 %v352
        %v504 = vpop.f32.mrb[0].mxu0
        %v505 = vadd.f32 0.0, %v504
        %v506 = vpop.f32.mrb[0].mxu0
        %v507 = vadd.f32 0.0, %v506
        %508 = vmatprep.mubr.f32.mxu0 0.0
        %509 = vmatmul.mubr.f32.gmra.mrb[0].mxu0 %v355
        %v510 = vpop.f32.mrb[0].mxu0
        %v511 = vadd.f32 0.0, %v510
        %v512 = vpop.f32.mrb[0].mxu0
        %v513 = vadd.f32 0.0, %v512
        %514 = vmatprep.mubr.f32.mxu0 0.0
        %515 = vmatmul.mubr.f32.gmra.mrb[0].mxu0 %v358
        %v516 = vpop.f32.mrb[0].mxu0
        %v517 = vadd.f32 0.0, %v516
        %v518 = vpop.f32.mrb[0].mxu0
        %v519 = vadd.f32 0.0, %v518
        %520 = vdwg.mxu0
        %v521 = vmin.f32 %v427, %v439
        %v522 = vmin.f32 %v433, %v445
        %v523 = vmin.f32 %v521, %v451
        %v524 = vmin.f32 %v522, %v457
        %v525 = vmin.f32 %v523, %v463
        %v526 = vmin.f32 %v524, %v469
        %v527 = vmin.f32 %v525, %v475
        %v528 = vmin.f32 %v526, %v481
        %v529 = vmin.f32 %v527, %v487
        %v530 = vmin.f32 %v528, %v493
        %v531 = vmin.f32 %v529, %v499
        %v532 = vmin.f32 %v530, %v505
        %v533 = vmin.f32 %v531, %v511
        %v534 = vmin.f32 %v532, %v517
        %v535 = vmin.f32 %v533, %v534
        %v536 = vrot.slane %v535, 4
        %v537 = vmin.f32 %v535, %v536
        %v538 = vrot.slane %v537, 2
        %v539 = vmin.f32 %v537, %v538
        %v540 = vrot.slane %v539, 1
        %v541 = vmin.f32 %v539, %v540
        %v542 = vmin.f32 %v429, %v441
        %v543 = vmin.f32 %v435, %v447
        %v544 = vmin.f32 %v542, %v453
        %v545 = vmin.f32 %v543, %v459
        %v546 = vmin.f32 %v544, %v465
        %v547 = vmin.f32 %v545, %v471
        %v548 = vmin.f32 %v546, %v477
        %v549 = vmin.f32 %v547, %v483
        %v550 = vmin.f32 %v548, %v489
        %v551 = vmin.f32 %v549, %v495
        %v552 = vmin.f32 %v550, %v501
        %v553 = vmin.f32 %v551, %v507
        %v554 = vmin.f32 %v552, %v513
        %v555 = vmin.f32 %v553, %v519
        %v556 = vmin.f32 %v554, %v555
        %v557 = vrot.slane %v556, 4
        %v558 = vmin.f32 %v556, %v557
        %v559 = vrot.slane %v558, 2
        %v560 = vmin.f32 %v558, %v559
        %v561 = vrot.slane %v560, 1
        %v562 = vmin.f32 %v560, %v561
        %v563 = vadd.s32 %v307, 8
        %v564 = vadd.s32 %v307, 16
        %v565 = vadd.s32 %v307, 24
        %v566 = vadd.s32 %v307, 32
        %v567 = vadd.s32 %v307, 40
        %v568 = vadd.s32 %v307, 48
        %v569 = vadd.s32 %v307, 56
        %v570 = vadd.s32 %v307, 64
        %v571 = vadd.s32 %v307, 72
        %v572 = vadd.s32 %v307, 80
        %v573 = vadd.s32 %v307, 88
        %v574 = vadd.s32 %v307, 96
        %v575 = vadd.s32 %v307, 104
        %v576 = vadd.s32 %v307, 112
        %v577 = vadd.s32 %v307, 120
        %vm578 = vcmp.eq.f32.partialorder %v427, %v541
        %vm579 = vcmp.eq.f32.partialorder %v429, %v562
        %vm580 = vcmp.eq.f32.partialorder %v433, %v541
        %vm581 = vcmp.eq.f32.partialorder %v435, %v562
        %vm582 = vcmp.eq.f32.partialorder %v439, %v541
        %vm583 = vcmp.eq.f32.partialorder %v441, %v562
        %vm584 = vcmp.eq.f32.partialorder %v445, %v541
        %vm585 = vcmp.eq.f32.partialorder %v447, %v562
        %vm586 = vcmp.eq.f32.partialorder %v451, %v541
        %vm587 = vcmp.eq.f32.partialorder %v453, %v562
        %vm588 = vcmp.eq.f32.partialorder %v457, %v541
        %vm589 = vcmp.eq.f32.partialorder %v459, %v562
        %vm590 = vcmp.eq.f32.partialorder %v463, %v541
        %vm591 = vcmp.eq.f32.partialorder %v465, %v562
        %vm592 = vcmp.eq.f32.partialorder %v469, %v541
        %vm593 = vcmp.eq.f32.partialorder %v471, %v562
        %vm594 = vcmp.eq.f32.partialorder %v475, %v541
        %vm595 = vcmp.eq.f32.partialorder %v477, %v562
        %vm596 = vcmp.eq.f32.partialorder %v481, %v541
        %vm597 = vcmp.eq.f32.partialorder %v483, %v562
        %vm598 = vcmp.eq.f32.partialorder %v487, %v541
        %vm599 = vcmp.eq.f32.partialorder %v489, %v562
        %vm600 = vcmp.eq.f32.partialorder %v493, %v541
        %vm601 = vcmp.eq.f32.partialorder %v495, %v562
        %vm602 = vcmp.eq.f32.partialorder %v499, %v541
        %vm603 = vcmp.eq.f32.partialorder %v501, %v562
        %vm604 = vcmp.eq.f32.partialorder %v505, %v541
        %vm605 = vcmp.eq.f32.partialorder %v507, %v562
        %vm606 = vcmp.eq.f32.partialorder %v511, %v541
        %vm607 = vcmp.eq.f32.partialorder %v513, %v562
        %vm608 = vcmp.eq.f32.partialorder %v517, %v541
        %vm609 = vcmp.eq.f32.partialorder %v519, %v562
        %v610 = vsel %vm578, %v307, 128
        %v611 = vsel %vm579, %v307, 128
        %v612 = vsel %vm580, %v563, 128
        %v613 = vsel %vm581, %v563, 128
        %v614 = vsel %vm582, %v564, 128
        %v615 = vsel %vm583, %v564, 128
        %v616 = vsel %vm584, %v565, 128
        %v617 = vsel %vm585, %v565, 128
        %v618 = vsel %vm586, %v566, 128
        %v619 = vsel %vm587, %v566, 128
        %v620 = vsel %vm588, %v567, 128
        %v621 = vsel %vm589, %v567, 128
        %v622 = vsel %vm590, %v568, 128
        %v623 = vsel %vm591, %v568, 128
        %v624 = vsel %vm592, %v569, 128
        %v625 = vsel %vm593, %v569, 128
        %v626 = vsel %vm594, %v570, 128
        %v627 = vsel %vm595, %v570, 128
        %v628 = vsel %vm596, %v571, 128
        %v629 = vsel %vm597, %v571, 128
        %v630 = vsel %vm598, %v572, 128
        %v631 = vsel %vm599, %v572, 128
        %v632 = vsel %vm600, %v573, 128
        %v633 = vsel %vm601, %v573, 128
        %v634 = vsel %vm602, %v574, 128
        %v635 = vsel %vm603, %v574, 128
        %v636 = vsel %vm604, %v575, 128
        %v637 = vsel %vm605, %v575, 128
        %v638 = vsel %vm606, %v576, 128
        %v639 = vsel %vm607, %v576, 128
        %v640 = vsel %vm608, %v577, 128
        %v641 = vsel %vm609, %v577, 128
        %vm642 = vcmp.lt.s32.totalorder %v610, %v614
        %v643 = vsel %vm642, %v610, %v614
        %vm644 = vcmp.lt.s32.totalorder %v612, %v616
        %v645 = vsel %vm644, %v612, %v616
        %vm646 = vcmp.lt.s32.totalorder %v643, %v618
        %v647 = vsel %vm646, %v643, %v618
        %vm648 = vcmp.lt.s32.totalorder %v645, %v620
        %v649 = vsel %vm648, %v645, %v620
        %vm650 = vcmp.lt.s32.totalorder %v647, %v622
        %v651 = vsel %vm650, %v647, %v622
        %vm652 = vcmp.lt.s32.totalorder %v649, %v624
        %v653 = vsel %vm652, %v649, %v624
        %vm654 = vcmp.lt.s32.totalorder %v651, %v626
        %v655 = vsel %vm654, %v651, %v626
        %vm656 = vcmp.lt.s32.totalorder %v653, %v628
        %v657 = vsel %vm656, %v653, %v628
        %vm658 = vcmp.lt.s32.totalorder %v655, %v630
        %v659 = vsel %vm658, %v655, %v630
        %vm660 = vcmp.lt.s32.totalorder %v657, %v632
        %v661 = vsel %vm660, %v657, %v632
        %vm662 = vcmp.lt.s32.totalorder %v659, %v634
        %v663 = vsel %vm662, %v659, %v634
        %vm664 = vcmp.lt.s32.totalorder %v661, %v636
        %v665 = vsel %vm664, %v661, %v636
        %vm666 = vcmp.lt.s32.totalorder %v663, %v638
        %v667 = vsel %vm666, %v663, %v638
        %vm668 = vcmp.lt.s32.totalorder %v665, %v640
        %v669 = vsel %vm668, %v665, %v640
        %vm670 = vcmp.lt.s32.totalorder %v667, %v669
        %v671 = vsel %vm670, %v667, %v669
        %v672 = vrot.slane %v671, 4
        %vm673 = vcmp.lt.s32.totalorder %v671, %v672
        %v674 = vsel %vm673, %v671, %v672
        %v675 = vrot.slane %v674, 2
        %vm676 = vcmp.lt.s32.totalorder %v674, %v675
        %v677 = vsel %vm676, %v674, %v675
        %v678 = vrot.slane %v677, 1
        %vm679 = vcmp.lt.s32.totalorder %v677, %v678
        %v680 = vsel %vm679, %v677, %v678
        %vm681 = vcmp.lt.s32.totalorder %v611, %v615
        %v682 = vsel %vm681, %v611, %v615
        %vm683 = vcmp.lt.s32.totalorder %v613, %v617
        %v684 = vsel %vm683, %v613, %v617
        %vm685 = vcmp.lt.s32.totalorder %v682, %v619
        %v686 = vsel %vm685, %v682, %v619
        %vm687 = vcmp.lt.s32.totalorder %v684, %v621
        %v688 = vsel %vm687, %v684, %v621
        %vm689 = vcmp.lt.s32.totalorder %v686, %v623
        %v690 = vsel %vm689, %v686, %v623
        %vm691 = vcmp.lt.s32.totalorder %v688, %v625
        %v692 = vsel %vm691, %v688, %v625
        %vm693 = vcmp.lt.s32.totalorder %v690, %v627
        %v694 = vsel %vm693, %v690, %v627
        %vm695 = vcmp.lt.s32.totalorder %v692, %v629
        %v696 = vsel %vm695, %v692, %v629
        %vm697 = vcmp.lt.s32.totalorder %v694, %v631
        %v698 = vsel %vm697, %v694, %v631
        %vm699 = vcmp.lt.s32.totalorder %v696, %v633
        %v700 = vsel %vm699, %v696, %v633
        %vm701 = vcmp.lt.s32.totalorder %v698, %v635
        %v702 = vsel %vm701, %v698, %v635
        %vm703 = vcmp.lt.s32.totalorder %v700, %v637
        %v704 = vsel %vm703, %v700, %v637
        %vm705 = vcmp.lt.s32.totalorder %v702, %v639
        %v706 = vsel %vm705, %v702, %v639
        %vm707 = vcmp.lt.s32.totalorder %v704, %v641
        %v708 = vsel %vm707, %v704, %v641
        %vm709 = vcmp.lt.s32.totalorder %v706, %v708
        %v710 = vsel %vm709, %v706, %v708
        %v711 = vrot.slane %v710, 4
        %vm712 = vcmp.lt.s32.totalorder %v710, %v711
        %v713 = vsel %vm712, %v710, %v711
        %v714 = vrot.slane %v713, 2
        %vm715 = vcmp.lt.s32.totalorder %v713, %v714
        %v716 = vsel %vm715, %v713, %v714
        %v717 = vrot.slane %v716, 1
        %vm718 = vcmp.lt.s32.totalorder %v716, %v717
        %v719 = vsel %vm718, %v716, %v717
        %v720 = vcombine.low %v680, %v719
        %v722 = vunpack.c.l.s4 1966171168
        %v723 = vunpack.c.0.s8 %v722
        %v724 = vlaneseq
        %v725 = vshrl.u32 %v724, 7
        %v726 = vsub.s32 %v723, %v725
        %v727 = vrot.slane %v720, %v726
        %v729 = vunpack.c.l.s4 1966171168
        %v730 = vunpack.c.0.s8 %v729
        %v731 = vlaneseq
        %v732 = vshrl.u32 %v731, 7
        %v733 = vsub.s32 %v730, %v732
        %v734 = vrot.slane %v727, %v733
        %v735 = vlaneseq
        %vm736 = vcmp.ge.s32.totalorder %v735, 0
        %vm737 = vcmp.lt.s32.totalorder %v735, 256
        %vm738 = vmand %vm736, %vm737
        %739 = vst.msk [vmem:[%s257] sm:$0x3] %vm738, %v734
        %vm740 = vcmp.eq.s32.totalorder %v307, %v680
        %vm741 = vcmp.eq.s32.totalorder %v307, %v719
        %vm742 = vcmp.eq.s32.totalorder %v563, %v680
        %vm743 = vcmp.eq.s32.totalorder %v563, %v719
        %vm744 = vcmp.eq.s32.totalorder %v564, %v680
        %vm745 = vcmp.eq.s32.totalorder %v564, %v719
        %vm746 = vcmp.eq.s32.totalorder %v565, %v680
        %vm747 = vcmp.eq.s32.totalorder %v565, %v719
        %vm748 = vcmp.eq.s32.totalorder %v566, %v680
        %vm749 = vcmp.eq.s32.totalorder %v566, %v719
        %vm750 = vcmp.eq.s32.totalorder %v567, %v680
        %vm751 = vcmp.eq.s32.totalorder %v567, %v719
        %vm752 = vcmp.eq.s32.totalorder %v568, %v680
        %vm753 = vcmp.eq.s32.totalorder %v568, %v719
        %vm754 = vcmp.eq.s32.totalorder %v569, %v680
        %vm755 = vcmp.eq.s32.totalorder %v569, %v719
        %vm756 = vcmp.eq.s32.totalorder %v570, %v680
        %vm757 = vcmp.eq.s32.totalorder %v570, %v719
        %vm758 = vcmp.eq.s32.totalorder %v571, %v680
        %vm759 = vcmp.eq.s32.totalorder %v571, %v719
        %vm760 = vcmp.eq.s32.totalorder %v572, %v680
        %vm761 = vcmp.eq.s32.totalorder %v572, %v719
        %vm762 = vcmp.eq.s32.totalorder %v573, %v680
        %vm763 = vcmp.eq.s32.totalorder %v573, %v719
        %vm764 = vcmp.eq.s32.totalorder %v574, %v680
        %vm765 = vcmp.eq.s32.totalorder %v574, %v719
        %vm766 = vcmp.eq.s32.totalorder %v575, %v680
        %vm767 = vcmp.eq.s32.totalorder %v575, %v719
        %vm768 = vcmp.eq.s32.totalorder %v576, %v680
        %vm769 = vcmp.eq.s32.totalorder %v576, %v719
        %vm770 = vcmp.eq.s32.totalorder %v577, %v680
        %vm771 = vcmp.eq.s32.totalorder %v577, %v719
        %v772 = vsel %vm740, 1, 0
        %v773 = vsel %vm741, 1, 0
        %v774 = vsel %vm742, 1, 0
        %v775 = vsel %vm743, 1, 0
        %v776 = vsel %vm744, 1, 0
        %v777 = vsel %vm745, 1, 0
        %v778 = vsel %vm746, 1, 0
        %v779 = vsel %vm747, 1, 0
        %v780 = vsel %vm748, 1, 0
        %v781 = vsel %vm749, 1, 0
        %v782 = vsel %vm750, 1, 0
        %v783 = vsel %vm751, 1, 0
        %v784 = vsel %vm752, 1, 0
        %v785 = vsel %vm753, 1, 0
        %v786 = vsel %vm754, 1, 0
        %v787 = vsel %vm755, 1, 0
        %v788 = vsel %vm756, 1, 0
        %v789 = vsel %vm757, 1, 0
        %v790 = vsel %vm758, 1, 0
        %v791 = vsel %vm759, 1, 0
        %v792 = vsel %vm760, 1, 0
        %v793 = vsel %vm761, 1, 0
        %v794 = vsel %vm762, 1, 0
        %v795 = vsel %vm763, 1, 0
        %v796 = vsel %vm764, 1, 0
        %v797 = vsel %vm765, 1, 0
        %v798 = vsel %vm766, 1, 0
        %v799 = vsel %vm767, 1, 0
        %v800 = vsel %vm768, 1, 0
        %v801 = vsel %vm769, 1, 0
        %v802 = vsel %vm770, 1, 0
        %v803 = vsel %vm771, 1, 0
        %v804 = vcvt.s32.f32 %v772
        %v805 = vcvt.s32.f32 %v773
        %v806 = vcvt.s32.f32 %v774
        %v807 = vcvt.s32.f32 %v775
        %v808 = vcvt.s32.f32 %v776
        %v809 = vcvt.s32.f32 %v777
        %v810 = vcvt.s32.f32 %v778
        %v811 = vcvt.s32.f32 %v779
        %v812 = vcvt.s32.f32 %v780
        %v813 = vcvt.s32.f32 %v781
        %v814 = vcvt.s32.f32 %v782
        %v815 = vcvt.s32.f32 %v783
        %v816 = vcvt.s32.f32 %v784
        %v817 = vcvt.s32.f32 %v785
        %v818 = vcvt.s32.f32 %v786
        %v819 = vcvt.s32.f32 %v787
        %v820 = vcvt.s32.f32 %v788
        %v821 = vcvt.s32.f32 %v789
        %v822 = vcvt.s32.f32 %v790
        %v823 = vcvt.s32.f32 %v791
        %v824 = vcvt.s32.f32 %v792
        %v825 = vcvt.s32.f32 %v793
        %v826 = vcvt.s32.f32 %v794
        %v827 = vcvt.s32.f32 %v795
        %v828 = vcvt.s32.f32 %v796
        %v829 = vcvt.s32.f32 %v797
        %v830 = vcvt.s32.f32 %v798
        %v831 = vcvt.s32.f32 %v799
        %v832 = vcvt.s32.f32 %v800
        %v833 = vcvt.s32.f32 %v801
        %v834 = vcvt.s32.f32 %v802
        %v835 = vcvt.s32.f32 %v803
        %836 = vmatprep.subr.mxu0 %v805
        %837 = vmatpush1.msra.mxu0 %v804
        %838 = vmatprep.subr.mxu0 %v807
        %839 = vmatpush1.msra.mxu0 %v806
        %840 = vmatprep.subr.mxu0 %v809
        %841 = vmatpush1.msra.mxu0 %v808
        %842 = vmatprep.subr.mxu0 %v811
        %843 = vmatpush1.msra.mxu0 %v810
        %844 = vmatprep.subr.mxu0 %v813
        %845 = vmatpush1.msra.mxu0 %v812
        %846 = vmatprep.subr.mxu0 %v815
        %847 = vmatpush1.msra.mxu0 %v814
        %848 = vmatprep.subr.mxu0 %v817
        %849 = vmatpush1.msra.mxu0 %v816
        %850 = vmatprep.subr.mxu0 %v819
        %851 = vmatpush1.msra.mxu0 %v818
        %852 = vmatprep.subr.mxu0 %v821
        %853 = vmatpush1.msra.mxu0 %v820
        %854 = vmatprep.subr.mxu0 %v823
        %855 = vmatpush1.msra.mxu0 %v822
        %856 = vmatprep.subr.mxu0 %v825
        %857 = vmatpush1.msra.mxu0 %v824
        %858 = vmatprep.subr.mxu0 %v827
        %859 = vmatpush1.msra.mxu0 %v826
        %860 = vmatprep.subr.mxu0 %v829
        %861 = vmatpush1.msra.mxu0 %v828
        %862 = vmatprep.subr.mxu0 %v831
        %863 = vmatpush1.msra.mxu0 %v830
        %864 = vmatprep.subr.mxu0 %v833
        %865 = vmatpush1.msra.mxu0 %v832
        %866 = vmatprep.subr.mxu0 %v835
        %867 = vmatpush1.msra.mxu0 %v834
        %868 = vmatprep.subr.mxu0 0.0
        %869 = vmatpush1.msra.mxu0 0.0
        %870 = vmatprep.subr.mxu0 0.0
        %871 = vmatpush1.msra.mxu0 0.0
        %872 = vmatprep.subr.mxu0 0.0
        %873 = vmatpush1.msra.mxu0 0.0
        %874 = vmatprep.subr.mxu0 0.0
        %875 = vmatpush1.msra.mxu0 0.0
        %876 = vmatprep.subr.mxu0 0.0
        %877 = vmatpush1.msra.mxu0 0.0
        %878 = vmatprep.subr.mxu0 0.0
        %879 = vmatpush1.msra.mxu0 0.0
        %880 = vmatprep.subr.mxu0 0.0
        %881 = vmatpush1.msra.mxu0 0.0
        %882 = vmatprep.subr.mxu0 0.0
        %883 = vmatpush1.msra.mxu0 0.0
        %884 = vmatprep.subr.mxu0 0.0
        %885 = vmatpush1.msra.mxu0 0.0
        %886 = vmatprep.subr.mxu0 0.0
        %887 = vmatpush1.msra.mxu0 0.0
        %888 = vmatprep.subr.mxu0 0.0
        %889 = vmatpush1.msra.mxu0 0.0
        %890 = vmatprep.subr.mxu0 0.0
        %891 = vmatpush1.msra.mxu0 0.0
        %892 = vmatprep.subr.mxu0 0.0
        %893 = vmatpush1.msra.mxu0 0.0
        %894 = vmatprep.subr.mxu0 0.0
        %895 = vmatpush1.msra.mxu0 0.0
        %896 = vmatprep.subr.mxu0 0.0
        %897 = vmatpush1.msra.mxu0 0.0
        %898 = vmatprep.subr.mxu0 0.0
        %899 = vmatpush1.msra.mxu0 0.0
        %900 = vmatprep.mubr.f32.mxu0 0.0
        %901 = vmatmul.mubr.f32.gmra.mrb[0].mxu0 %v302
        %v902 = vpop.f32.mrb[0].mxu0
        %v903 = vadd.f32 0.0, %v902
        %v904 = vpop.f32.mrb[0].mxu0
        %v905 = vadd.f32 0.0, %v904
        %906 = vmatprep.mubr.f32.mxu0 0.0
        %907 = vmatmul.mubr.f32.gmra.mrb[0].mxu0 %v303
        %v908 = vpop.f32.mrb[0].mxu0
        %v909 = vadd.f32 0.0, %v908
        %v910 = vpop.f32.mrb[0].mxu0
        %v911 = vadd.f32 0.0, %v910
        %912 = vmatprep.mubr.f32.mxu0 0.0
        %913 = vmatmul.mubr.f32.gmra.mrb[0].mxu0 %v304
        %v914 = vpop.f32.mrb[0].mxu0
        %v915 = vadd.f32 0.0, %v914
        %v916 = vpop.f32.mrb[0].mxu0
        %v917 = vadd.f32 0.0, %v916
        %918 = vmatprep.mubr.f32.mxu0 0.0
        %919 = vmatmul.mubr.f32.gmra.mrb[0].mxu0 %v305
        %v920 = vpop.f32.mrb[0].mxu0
        %v921 = vadd.f32 0.0, %v920
        %v922 = vpop.f32.mrb[0].mxu0
        %v923 = vadd.f32 0.0, %v922
        %924 = vdwg.mxu0
        %925 = vst [vmem:[%s250] sm:$0xff] %v903
        %926 = vst [vmem:[%s250 + $0x8] sm:$0xff] %v905
        %927 = vst [vmem:[%s250 + $0x10] sm:$0xff] %v909
        %928 = vst [vmem:[%s250 + $0x18] sm:$0xff] %v911
        %929 = vst [vmem:[%s250 + $0x20] sm:$0xff] %v915
        %930 = vst [vmem:[%s250 + $0x28] sm:$0xff] %v917
        %931 = vst [vmem:[%s250 + $0x30] sm:$0xff] %v921
        %932 = vst [vmem:[%s250 + $0x38] sm:$0xff] %v923
        %v933 = vmul.f32 %v278, %v278
        %v934 = vmul.f32 %v279, %v279
        %v935 = vmul.f32 %v280, %v280
        %v936 = vmul.f32 %v281, %v281
        %v937 = vmul.f32 %v282, %v282
        %v938 = vmul.f32 %v283, %v283
        %v939 = vmul.f32 %v284, %v284
        %v940 = vmul.f32 %v285, %v285
        %v941 = vadd.f32 %v933, %v935
        %v942 = vadd.f32 %v941, %v937
        %v943 = vadd.f32 %v942, %v939
        %v944 = vrot.slane %v943, 4
        %v945 = vadd.f32 %v943, %v944
        %v946 = vrot.slane %v945, 2
        %v947 = vadd.f32 %v945, %v946
        %v948 = vrot.slane %v947, 1
        %v949 = vadd.f32 %v947, %v948
        %v950 = vadd.f32 %v934, %v936
        %v951 = vadd.f32 %v950, %v938
        %v952 = vadd.f32 %v951, %v940
        %v953 = vrot.slane %v952, 4
        %v954 = vadd.f32 %v952, %v953
        %v955 = vrot.slane %v954, 2
        %v956 = vadd.f32 %v954, %v955
        %v957 = vrot.slane %v956, 1
        %v958 = vadd.f32 %v956, %v957
        %v959 = vmul.f32 %v541, 2.0
        %v960 = vmul.f32 %v562, 2.0
        %v961 = vadd.f32 %v949, %v959
        %v962 = vadd.f32 %v958, %v960
        %v965 = vcombine.low %v961, %v962
        %v967 = vunpack.c.l.s4 1966171168
        %v968 = vunpack.c.0.s8 %v967
        %v969 = vlaneseq
        %v970 = vshrl.u32 %v969, 7
        %v971 = vsub.s32 %v968, %v970
        %v972 = vrot.slane %v965, %v971
        %v974 = vunpack.c.l.s4 1966171168
        %v975 = vunpack.c.0.s8 %v974
        %v976 = vlaneseq
        %v977 = vshrl.u32 %v976, 7
        %v978 = vsub.s32 %v975, %v977
        %v979 = vrot.slane %v972, %v978
        %981 = vst.msk [vmem:[%s264] sm:$0x3] %vm738, %v979
        %s982 = sand.u32 %s115, 1
        %s983 = scalar_lea.sflag [#allocation3], %s982
        %s984 = sand.u32 %s115, 1
        %s985 = smul.addr %s984, 64
        %s986 = scalar_lea.vmem [#allocation2], %s985
        %s987 = sand.u32 %s23, 1
        %s988 = scalar_lea.sflag [#allocation5], %s987
        %s989 = sand.u32 %s143, 1
        %s990 = smul.addr %s989, 2
        %s991 = scalar_lea.vmem [#allocation4], %s990
        %s992 = sand.u32 %s23, 1
        %s993 = scalar_lea.sflag [#allocation5], %s992
        %s994 = sand.u32 %s171, 1
        %s995 = smul.addr %s994, 2
        %s996 = scalar_lea.vmem [#allocation6], %s995
        // Predicated region
        $region33: #{tpu_custom_call.1} parent=31 // pred_check
          %p997 = pneg %p125
        $region34: #{tpu_custom_call.1} parent=31 // pred_check_branch
          %999 = sbr.rel (%p997) target = $region36
        $region35: #{tpu_custom_call.1} parent=31 // pred_region
          %s1000 = smul.u32 2, %s28
          %s1002 = ssub.s32 1024, 1024
          %1003 = vsyncadd %s983, %s1002
          %s1004 = smul.addr %s27, 8
          %s1005 = sadd.s32 %s1000, %s1004
          %s1006 = smul.addr %s1005, 128
          %s1007 = scalar_lea.hbm %s3, %s1006
          %s1008 = sshll.u32 %s986, 4
          %s1009 = int_to_ptr.vmem [resolvable:$true] %s1008
          %1014 = dma.vmem_to_hbm [thread:$0]  %s1009, 1024, %s1007, %s983, 256, 256, 16
        $region36: #{tpu_custom_call.1} parent=31 // pred_fallthru
          _
        // Predicated region
        $region37: #{tpu_custom_call.1} parent=31 // pred_check
          %p1015 = pneg %p153
        $region38: #{tpu_custom_call.1} parent=31 // pred_check_branch
          %1017 = sbr.rel (%p1015) target = $region40
        $region39: #{tpu_custom_call.1} parent=31 // pred_region
          %s1018 = smul.u32 2, %s28
          %s1020 = ssub.s32 32, 32
          %1021 = vsyncadd %s988, %s1020
          %s1022 = smul.addr %s27, 2
          %s1023 = sadd.s32 %s1018, %s1022
          %s1024 = smul.addr %s1023, 16
          %s1025 = scalar_lea.hbm %s4, %s1024
          %s1027 = sshll.u32 %s991, 4
          %s1028 = int_to_ptr.vmem [resolvable:$true] %s1027
          %1030 = dma.vmem_to_hbm [thread:$0]  %s1028, 32, %s1025, %s988
        $region40: #{tpu_custom_call.1} parent=31 // pred_fallthru
          _
        // Predicated region
        $region41: #{tpu_custom_call.1} parent=31 // pred_check
          %p1031 = pneg %p181
        $region42: #{tpu_custom_call.1} parent=31 // pred_check_branch
          %1033 = sbr.rel (%p1031) target = $region44
        $region43: #{tpu_custom_call.1} parent=31 // pred_region
          %s1034 = smul.u32 2, %s28
          %s1036 = ssub.s32 32, 32
          %1037 = vsyncadd %s993, %s1036
          %s1038 = smul.addr %s27, 2
          %s1039 = sadd.s32 %s1034, %s1038
          %s1040 = smul.addr %s1039, 16
          %s1041 = scalar_lea.hbm %s5, %s1040
          %s1043 = sshll.u32 %s996, 4
          %s1044 = int_to_ptr.vmem [resolvable:$true] %s1043
          %1046 = dma.vmem_to_hbm [thread:$0]  %s1044, 32, %s1041, %s993
        $region44: #{tpu_custom_call.1} parent=31 // pred_fallthru
          _
      $region32: #{tpu_custom_call.1} parent=5 // pred_fallthru
        _
      %p1047 = scmp.le.s32.totalorder 2, %s18
      // Predicated region
      $region45: #{tpu_custom_call.1} parent=5 // pred_check
        %p1048 = pneg %p1047
      $region46: #{tpu_custom_call.1} parent=5 // pred_check_branch
        %1050 = sbr.rel (%p1048) target = $region48
      $region47: #{tpu_custom_call.1} parent=5 // pred_region
        %s1051 = ssub.s32 %s18, 2
        // Predicated region
        $region49: #{tpu_custom_call.1} parent=47 // pred_check
          %p1052 = pneg %p131
        $region50: #{tpu_custom_call.1} parent=47 // pred_check_branch
          %1054 = sbr.rel (%p1052) target = $region52
        $region51: #{tpu_custom_call.1} parent=47 // pred_region
          %s1055 = sand.u32 %s116, 1
          %s1056 = scalar_lea.sflag [#allocation3], %s1055
          %s1057 = sand.u32 %s116, 1
          %s1058 = smul.addr %s1057, 64
          %s1059 = scalar_lea.vmem [#allocation2], %s1058
          %1060 = dma.done %s1056, 1024
        $region52: #{tpu_custom_call.1} parent=47 // pred_fallthru
          _
        // Predicated region
        $region53: #{tpu_custom_call.1} parent=47 // pred_check
          %p1061 = pneg %p159
        $region54: #{tpu_custom_call.1} parent=47 // pred_check_branch
          %1063 = sbr.rel (%p1061) target = $region56
        $region55: #{tpu_custom_call.1} parent=47 // pred_region
          %s1064 = sand.u32 %s24, 1
          %s1065 = scalar_lea.sflag [#allocation5], %s1064
          %s1066 = sand.u32 %s144, 1
          %s1067 = smul.addr %s1066, 2
          %s1068 = scalar_lea.vmem [#allocation4], %s1067
          %1069 = dma.done %s1065, 32
        $region56: #{tpu_custom_call.1} parent=47 // pred_fallthru
          _
        // Predicated region
        $region57: #{tpu_custom_call.1} parent=47 // pred_check
          %p1070 = pneg %p187
        $region58: #{tpu_custom_call.1} parent=47 // pred_check_branch
          %1072 = sbr.rel (%p1070) target = $region60
        $region59: #{tpu_custom_call.1} parent=47 // pred_region
          %s1073 = sand.u32 %s24, 1
          %s1074 = scalar_lea.sflag [#allocation5], %s1073
          %s1075 = sand.u32 %s172, 1
          %s1076 = smul.addr %s1075, 2
          %s1077 = scalar_lea.vmem [#allocation6], %s1076
          %1078 = dma.done %s1074, 32
        $region60: #{tpu_custom_call.1} parent=47 // pred_fallthru
          _
      $region48: #{tpu_custom_call.1} parent=5 // pred_fallthru
        _
    $region6: #{tpu_custom_call.1} parent=1 // loop_footer
      %s22 = sadd.s32 1, %s18
    $region7: #{tpu_custom_call.1} parent=1 // loop_footer_branch
      %17 = sbr.rel target = $region3
    $region8: #{tpu_custom_call.1} parent=1 // loop_exit
      _
    %1079 = vsyncpa [#allocation3], 1
    %s1080 = scalar_lea.sflag [#allocation3], 1
    %1081 = vsyncpa %s1080, 1
    %1082 = vsyncpa [#allocation5], 1
    %s1083 = scalar_lea.sflag [#allocation5], 1
    %1084 = vsyncpa %s1083, 1

// kernel: tpu_custom_call.1
$region0: #{tpu_custom_call.1}
  #allocation0 [shape = 'u32[]', space=smem, size = 0x4, offset = 0x4, fixed_abs, tag = 'smem constant byte address 0x4 - core index']
  #allocation1 [shape = 'u32[144,128]{1,0:T(1,128)}', space=vmem, size = 0x12000, scoped, tag = 'internal scratch']
  %s0 = inlined_call_operand.vmem [shape: f32[2,32,256], index: 0, kind: input, shape index: {}]
  %s1 = inlined_call_operand.vmem [shape: f32[128,40], index: 1, kind: input, shape index: {}]
  %s2 = inlined_call_operand.vmem [shape: f32[32,128], index: 2, kind: input, shape index: {}]
  %s3 = inlined_call_operand.hbm [shape: f32[2,32,256], index: 3, kind: output, shape index: {0}]
  %s4 = inlined_call_operand.hbm [shape: s32[2,1,256], index: 4, kind: output, shape index: {1}]
  %s5 = inlined_call_operand.hbm [shape: f32[2,1,256], index: 5, kind: output, shape index: {2}]
  %6 = xla_tuple %s3, %s4, %s5
  %s7 = sld [smem:[#allocation0]]
  $region61: #{tpu_custom_call.1} parent=0
    _
  %s9 = ssub.s32 1, %s7
  %s10 = scalar_select 0, %s9, %s7
  $region1: #{tpu_custom_call.1} parent=0
    #allocation2 [shape = 'u8[65536]{0}', space=vmem, size = 0x10000, scoped, tag = 'output window, operand 0']
    #allocation3 [shape = 's32[2]{0}', space=sflag, size = 0x8, scoped, tag = 'scoped memory for tpu_custom_call.1']
    #allocation4 [shape = 'u8[2048]{0}', space=vmem, size = 0x800, scoped, tag = 'output window, operand 1']
    #allocation5 [shape = 's32[2]{0}', space=sflag, size = 0x8, scoped, tag = 'scoped memory for tpu_custom_call.1']
    #allocation6 [shape = 'u8[2048]{0}', space=vmem, size = 0x800, scoped, tag = 'output window, operand 2']
    %11 = vsyncpa [#allocation3], 0
    %s12 = scalar_lea.sflag [#allocation3], 1
    %13 = vsyncpa %s12, 0
    %14 = vsyncpa [#allocation5], 0
    %s15 = scalar_lea.sflag [#allocation5], 1
    %16 = vsyncpa %s15, 0
    loop: start=0, step=1, limit=4
    $region2: #{tpu_custom_call.1} parent=1 // loop_pre_header
      _
    $region3: #{tpu_custom_call.1} parent=1 // loop_header
      %s18 = sphi 0, %s22
      %p19 = scmp.ge.s32.totalorder %s18, 4
      %s25 = sphi 0, %s37
      %s26 = sphi 0, %s33
      %s27 = sphi 0, %s25
      %s28 = sphi 0, %s26
      %s29 = sphi 0, %s27
      %s30 = sphi 0, %s28
      %s42 = sphi 0, %s44
      %s45 = sphi 0, %s42
      %s46 = sphi 0, %s45
      %s62 = sphi 0, %s46
      %s66 = sphi 0, %s66
      %s68 = sphi 0, %s66
      %s69 = sphi 0, %s68
      %s83 = sphi 0, %s69
      %s87 = sphi 0, %s87
      %s89 = sphi 0, %s87
      %s90 = sphi 0, %s89
      %s104 = sphi 0, %s90
      %s112 = sphi 0, %s114
      %s115 = sphi 0, %s112
      %s116 = sphi 0, %s115
      %s132 = sphi 0, %s116
      %s140 = sphi 0, %s142
      %s143 = sphi 0, %s140
      %s144 = sphi 0, %s143
      %s160 = sphi 0, %s144
      %s168 = sphi 0, %s170
      %s171 = sphi 0, %s168
      %s172 = sphi 0, %s171
      %s188 = sphi 0, %s172
    $region4: #{tpu_custom_call.1} parent=1 // loop_header_branch
      %21 = sbr.rel (%p19) target = $region8
    $region5: #{tpu_custom_call.1} parent=1 // loop_body
      %s23 = ssub.s32 %s18, 1
      %s24 = ssub.s32 %s18, 2
      %s31 = sadd.s32 1, %s26
      %p32 = scmp.ge.s32.totalorder %s31, 1
      %s33 = scalar_select %p32, 0, %s31
      %s34 = sadd.s32 1, %s25
      %s35 = scalar_select %p32, %s34, %s25
      %p36 = scmp.ge.s32.totalorder %s35, 2
      %s37 = scalar_select %p36, 0, %s35
      %s38 = ssub.s32 %s25, %s37
      %s39 = ssub.s32 %s26, %s33
      %s40 = sor.u32 %s38, %s39
      %p41 = scmp.eq.s32.totalorder %s40, 0
      %s43 = sadd.s32 %s42, 1
      %s44 = scalar_select %p41, %s42, %s43
      %p47 = pneg %p41
      %p48 = scmp.eq.s32.totalorder %s18, 1
      %p49 = por %p47, %p48
      %p50 = scmp.ne.s32.totalorder %s42, %s45
      %p51 = scmp.eq.s32.totalorder %s18, 0
      %p52 = por %p50, %p51
      %p53 = scmp.ne.s32.totalorder %s42, %s45
      %p54 = scmp.eq.s32.totalorder %s23, 1
      %p55 = por %p53, %p54
      %p56 = scmp.ne.s32.totalorder %s45, %s46
      %p57 = scmp.eq.s32.totalorder %s23, 0
      %p58 = por %p56, %p57
      %p59 = scmp.ne.s32.totalorder %s45, %s46
      %p60 = scmp.eq.s32.totalorder %s24, 1
      %p61 = por %p59, %p60
      %p63 = scmp.ne.s32.totalorder %s46, %s62
      %p64 = scmp.eq.s32.totalorder %s24, 0
      %p65 = por %p63, %p64
      %s67 = sadd.s32 %s66, 1
      %p70 = scmp.eq.s32.totalorder %s18, 1
      %p71 = scmp.ne.s32.totalorder %s66, %s68
      %p72 = scmp.eq.s32.totalorder %s18, 0
      %p73 = por %p71, %p72
      %p74 = scmp.ne.s32.totalorder %s66, %s68
      %p75 = scmp.eq.s32.totalorder %s23, 1
      %p76 = por %p74, %p75
      %p77 = scmp.ne.s32.totalorder %s68, %s69
      %p78 = scmp.eq.s32.totalorder %s23, 0
      %p79 = por %p77, %p78
      %p80 = scmp.ne.s32.totalorder %s68, %s69
      %p81 = scmp.eq.s32.totalorder %s24, 1
      %p82 = por %p80, %p81
      %p84 = scmp.ne.s32.totalorder %s69, %s83
      %p85 = scmp.eq.s32.totalorder %s24, 0
      %p86 = por %p84, %p85
      %s88 = sadd.s32 %s87, 1
      %p91 = scmp.eq.s32.totalorder %s18, 1
      %p92 = scmp.ne.s32.totalorder %s87, %s89
      %p93 = scmp.eq.s32.totalorder %s18, 0
      %p94 = por %p92, %p93
      %p95 = scmp.ne.s32.totalorder %s87, %s89
      %p96 = scmp.eq.s32.totalorder %s23, 1
      %p97 = por %p95, %p96
      %p98 = scmp.ne.s32.totalorder %s89, %s90
      %p99 = scmp.eq.s32.totalorder %s23, 0
      %p100 = por %p98, %p99
      %p101 = scmp.ne.s32.totalorder %s89, %s90
      %p102 = scmp.eq.s32.totalorder %s24, 1
      %p103 = por %p101, %p102
      %p105 = scmp.ne.s32.totalorder %s90, %s104
      %p106 = scmp.eq.s32.totalorder %s24, 0
      %p107 = por %p105, %p106
      %s108 = ssub.s32 %s25, %s37
      %s109 = ssub.s32 %s26, %s33
      %s110 = sor.u32 %s108, %s109
      %p111 = scmp.eq.s32.totalorder %s110, 0
      %s113 = sadd.s32 %s112, 1
      %s114 = scalar_select %p111, %s112, %s113
      %p117 = pneg %p111
      %p118 = scmp.eq.s32.totalorder %s18, 1
      %p119 = por %p117, %p118
      %p120 = scmp.ne.s32.totalorder %s112, %s115
      %p121 = scmp.eq.s32.totalorder %s18, 0
      %p122 = por %p120, %p121
      %p123 = scmp.ne.s32.totalorder %s112, %s115
      %p124 = scmp.eq.s32.totalorder %s23, 1
      %p125 = por %p123, %p124
      %p126 = scmp.ne.s32.totalorder %s115, %s116
      %p127 = scmp.eq.s32.totalorder %s23, 0
      %p128 = por %p126, %p127
      %p129 = scmp.ne.s32.totalorder %s115, %s116
      %p130 = scmp.eq.s32.totalorder %s24, 1
      %p131 = por %p129, %p130
      %p133 = scmp.ne.s32.totalorder %s116, %s132
      %p134 = scmp.eq.s32.totalorder %s24, 0
      %p135 = por %p133, %p134
      %s136 = ssub.s32 %s25, %s37
      %s137 = ssub.s32 %s26, %s33
      %s138 = sor.u32 %s136, %s137
      %p139 = scmp.eq.s32.totalorder %s138, 0
      %s141 = sadd.s32 %s140, 1
      %s142 = scalar_select %p139, %s140, %s141
      %p145 = pneg %p139
      %p146 = scmp.eq.s32.totalorder %s18, 1
      %p147 = por %p145, %p146
      %p148 = scmp.ne.s32.totalorder %s140, %s143
      %p149 = scmp.eq.s32.totalorder %s18, 0
      %p150 = por %p148, %p149
      %p151 = scmp.ne.s32.totalorder %s140, %s143
      %p152 = scmp.eq.s32.totalorder %s23, 1
      %p153 = por %p151, %p152
      %p154 = scmp.ne.s32.totalorder %s143, %s144
      %p155 = scmp.eq.s32.totalorder %s23, 0
      %p156 = por %p154, %p155
      %p157 = scmp.ne.s32.totalorder %s143, %s144
      %p158 = scmp.eq.s32.totalorder %s24, 1
      %p159 = por %p157, %p158
      %p161 = scmp.ne.s32.totalorder %s144, %s160
      %p162 = scmp.eq.s32.totalorder %s24, 0
      %p163 = por %p161, %p162
      %s164 = ssub.s32 %s25, %s37
      %s165 = ssub.s32 %s26, %s33
      %s166 = sor.u32 %s164, %s165
      %p167 = scmp.eq.s32.totalorder %s166, 0
      %s169 = sadd.s32 %s168, 1
      %s170 = scalar_select %p167, %s168, %s169
      %p173 = pneg %p167
      %p174 = scmp.eq.s32.totalorder %s18, 1
      %p175 = por %p173, %p174
      %p176 = scmp.ne.s32.totalorder %s168, %s171
      %p177 = scmp.eq.s32.totalorder %s18, 0
      %p178 = por %p176, %p177
      %p179 = scmp.ne.s32.totalorder %s168, %s171
      %p180 = scmp.eq.s32.totalorder %s23, 1
      %p181 = por %p179, %p180
      %p182 = scmp.ne.s32.totalorder %s171, %s172
      %p183 = scmp.eq.s32.totalorder %s23, 0
      %p184 = por %p182, %p183
      %p185 = scmp.ne.s32.totalorder %s171, %s172
      %p186 = scmp.eq.s32.totalorder %s24, 1
      %p187 = por %p185, %p186
      %p189 = scmp.ne.s32.totalorder %s172, %s188
      %p190 = scmp.eq.s32.totalorder %s24, 0
      %p191 = por %p189, %p190
      %p192 = scmp.le.s32.totalorder 1, %s18
      %p193 = scmp.lt.s32.totalorder %s18, 3
      %p194 = pnand %p192, %p193
      %p195 = pneg %p194
      // Predicated region
      $region9: #{tpu_custom_call.1} parent=5 // pred_check
        _
      $region10: #{tpu_custom_call.1} parent=5 // pred_check_branch
        %197 = sbr.rel (%p194) target = $region12
      $region11: #{tpu_custom_call.1} parent=5 // pred_region
        %s198 = ssub.s32 %s18, 1
        // Predicated region
        $region13: #{tpu_custom_call.1} parent=11 // pred_check
          %p199 = pneg %p79
        $region14: #{tpu_custom_call.1} parent=11 // pred_check_branch
          %201 = sbr.rel (%p199) target = $region16
        $region15: #{tpu_custom_call.1} parent=11 // pred_region
          _
        $region16: #{tpu_custom_call.1} parent=11 // pred_fallthru
          _
        // Predicated region
        $region17: #{tpu_custom_call.1} parent=11 // pred_check
          %p202 = pneg %p100
        $region18: #{tpu_custom_call.1} parent=11 // pred_check_branch
          %204 = sbr.rel (%p202) target = $region20
        $region19: #{tpu_custom_call.1} parent=11 // pred_region
          _
        $region20: #{tpu_custom_call.1} parent=11 // pred_fallthru
          _
      $region12: #{tpu_custom_call.1} parent=5 // pred_fallthru
        _
      %p205 = scmp.lt.s32.totalorder %s18, 2
      // Predicated region
      $region21: #{tpu_custom_call.1} parent=5 // pred_check
        %p206 = pneg %p205
      $region22: #{tpu_custom_call.1} parent=5 // pred_check_branch
        %208 = sbr.rel (%p206) target = $region24
      $region23: #{tpu_custom_call.1} parent=5 // pred_region
        // Predicated region
        $region25: #{tpu_custom_call.1} parent=23 // pred_check
          %p209 = pneg %p52
        $region26: #{tpu_custom_call.1} parent=23 // pred_check_branch
          %211 = sbr.rel (%p209) target = $region28
        $region27: #{tpu_custom_call.1} parent=23 // pred_region
          %s212 = smul.u32 2, %s26
          %p213 = scmp.lt.s32.totalorder %s25, 1
          %s214 = scalar_select %p213, %s25, 1
          %p215 = scmp.lt.s32.totalorder %s212, 1
          %s216 = scalar_select %p215, %s212, 1
          %s217 = smul.addr %s214, 8
          %s218 = sadd.s32 %s216, %s217
          %s219 = smul.addr %s218, 8
          %s220 = scalar_lea.vmem %s0, %s219
          %s221 = smul.u32 2, %s26
        $region28: #{tpu_custom_call.1} parent=23 // pred_fallthru
          _
      $region24: #{tpu_custom_call.1} parent=5 // pred_fallthru
        _
      %p222 = scmp.le.s32.totalorder 1, %s18
      %p223 = scmp.lt.s32.totalorder %s18, 3
      %p224 = pnand %p222, %p223
      %p225 = pneg %p224
      // Predicated region
      $region29: #{tpu_custom_call.1} parent=5 // pred_check
        _
      $region30: #{tpu_custom_call.1} parent=5 // pred_check_branch
        %227 = sbr.rel (%p224) target = $region32
      $region31: #{tpu_custom_call.1} parent=5 // pred_region
        %s228 = ssub.s32 %s18, 1
        %s229 = smul.u32 2, %s28
        %p230 = scmp.lt.s32.totalorder %s27, 1
        %s231 = scalar_select %p230, %s27, 1
        %p232 = scmp.lt.s32.totalorder %s229, 1
        %s233 = scalar_select %p232, %s229, 1
        %s234 = smul.addr %s231, 8
        %s235 = sadd.s32 %s233, %s234
        %s236 = smul.addr %s235, 8
        %s237 = scalar_lea.vmem %s0, %s236
        %p238 = pneg %p58
        %p239 = pneg %p55
        %p240 = pneg %p79
        %p241 = pneg %p76
        %p242 = pneg %p100
        %p243 = pneg %p97
        %p244 = pneg %p128
        %p245 = pneg %p125
        %s246 = sand.u32 %s115, 1
        %s247 = scalar_lea.sflag [#allocation3], %s246
        %s248 = sand.u32 %s115, 1
        %s249 = smul.addr %s248, 64
        %s250 = scalar_lea.vmem [#allocation2], %s249
        %p251 = pneg %p156
        %p252 = pneg %p153
        %s253 = sand.u32 %s23, 1
        %s254 = scalar_lea.sflag [#allocation5], %s253
        %s255 = sand.u32 %s143, 1
        %s256 = smul.addr %s255, 2
        %s257 = scalar_lea.vmem [#allocation4], %s256
        %p258 = pneg %p184
        %p259 = pneg %p181
        %s260 = sand.u32 %s23, 1
        %s261 = scalar_lea.sflag [#allocation5], %s260
        %s262 = sand.u32 %s171, 1
        %s263 = smul.addr %s262, 2
        %s264 = scalar_lea.vmem [#allocation6], %s263
        %s265 = smul.u32 2, %s28
        %p266 = scmp.lt.s32.totalorder %s27, 1
        %s267 = scalar_select %p266, %s27, 1
        %p268 = scmp.lt.s32.totalorder %s265, 1
        %s269 = scalar_select %p268, %s265, 1
        %s270 = smul.addr %s267, 8
        %s271 = sadd.s32 %s269, %s270
        %s272 = smul.addr %s271, 8
        %s273 = scalar_lea.vmem %s0, %s272
        %s274 = smul.u32 2, %s28
        %s275 = smul.u32 2, %s28
        %s276 = smul.u32 2, %s28
        %s277 = smul.u32 2, %s28
        %v278 = vld [vmem:[%s273] sm:$0xff]
        %v279 = vld [vmem:[%s273 + $0x8] sm:$0xff]
        %v280 = vld [vmem:[%s273 + $0x10] sm:$0xff]
        %v281 = vld [vmem:[%s273 + $0x18] sm:$0xff]
        %v282 = vld [vmem:[%s273 + $0x20] sm:$0xff]
        %v283 = vld [vmem:[%s273 + $0x28] sm:$0xff]
        %v284 = vld [vmem:[%s273 + $0x30] sm:$0xff]
        %v285 = vld [vmem:[%s273 + $0x38] sm:$0xff]
        %v286 = vld [vmem:[%s1] sm:$0xff]
        %v287 = vld [vmem:[%s1 + $0x8] sm:$0xff]
        %v288 = vld [vmem:[%s1 + $0x10] sm:$0xff]
        %v289 = vld [vmem:[%s1 + $0x18] sm:$0xff]
        %v290 = vld [vmem:[%s1 + $0x20] sm:$0xff]
        %v291 = vld [vmem:[%s1 + $0x28] sm:$0xff]
        %v292 = vld [vmem:[%s1 + $0x30] sm:$0xff]
        %v293 = vld [vmem:[%s1 + $0x38] sm:$0xff]
        %v294 = vld [vmem:[%s1 + $0x40] sm:$0xff]
        %v295 = vld [vmem:[%s1 + $0x48] sm:$0xff]
        %v296 = vld [vmem:[%s1 + $0x50] sm:$0xff]
        %v297 = vld [vmem:[%s1 + $0x58] sm:$0xff]
        %v298 = vld [vmem:[%s1 + $0x60] sm:$0xff]
        %v299 = vld [vmem:[%s1 + $0x68] sm:$0xff]
        %v300 = vld [vmem:[%s1 + $0x70] sm:$0xff]
        %v301 = vld [vmem:[%s1 + $0x78] sm:$0xff]
        %v302 = vld [vmem:[%s2] sm:$0xff]
        %v303 = vld [vmem:[%s2 + $0x8] sm:$0xff]
        %v304 = vld [vmem:[%s2 + $0x10] sm:$0xff]
        %v305 = vld [vmem:[%s2 + $0x18] sm:$0xff]
        %v306 = vlaneseq
        %v307 = vshrl.u32 %v306, 7
        %vm308 = vcmp.eq.s32.totalorder %v307, 0
        %v309 = vsel %vm308, 1, 0
        %v310 = vcvt.s32.f32 %v309
        %vm311 = vcmask 326656
        %v313 = vsel %vm311, %v286, 0
        %v316 = vsel %vm311, %v287, 0
        %v319 = vsel %vm311, %v288, 0
        %v322 = vsel %vm311, %v289, 0
        %v325 = vsel %vm311, %v290, 0
        %v328 = vsel %vm311, %v291, 0
        %v331 = vsel %vm311, %v292, 0
        %v334 = vsel %vm311, %v293, 0
        %v337 = vsel %vm311, %v294, 0
        %v340 = vsel %vm311, %v295, 0
        %v343 = vsel %vm311, %v296, 0
        %v346 = vsel %vm311, %v297, 0
        %v349 = vsel %vm311, %v298, 0
        %v352 = vsel %vm311, %v299, 0
        %v355 = vsel %vm311, %v300, 0
        %v358 = vsel %vm311, %v301, 0
        %360 = vmatprep.subr.mxu0 %v279
        %361 = vmatpush1.msra.mxu0 %v278
        %362 = vmatprep.subr.mxu0 %v281
        %363 = vmatpush1.msra.mxu0 %v280
        %364 = vmatprep.subr.mxu0 %v283
        %365 = vmatpush1.msra.mxu0 %v282
        %366 = vmatprep.subr.mxu0 %v285
        %367 = vmatpush1.msra.mxu0 %v284
        %368 = vmatprep.subr.mxu0 %v310
        %369 = vmatpush1.msra.mxu0 %v310
        %370 = vmatprep.subr.mxu0 0.0
        %371 = vmatpush1.msra.mxu0 0.0
        %372 = vmatprep.subr.mxu0 0.0
        %373 = vmatpush1.msra.mxu0 0.0
        %374 = vmatprep.subr.mxu0 0.0
        %375 = vmatpush1.msra.mxu0 0.0
        %376 = vmatprep.subr.mxu0 0.0
        %377 = vmatpush1.msra.mxu0 0.0
        %378 = vmatprep.subr.mxu0 0.0
        %379 = vmatpush1.msra.mxu0 0.0
        %380 = vmatprep.subr.mxu0 0.0
        %381 = vmatpush1.msra.mxu0 0.0
        %382 = vmatprep.subr.mxu0 0.0
        %383 = vmatpush1.msra.mxu0 0.0
        %384 = vmatprep.subr.mxu0 0.0
        %385 = vmatpush1.msra.mxu0 0.0
        %386 = vmatprep.subr.mxu0 0.0
        %387 = vmatpush1.msra.mxu0 0.0
        %388 = vmatprep.subr.mxu0 0.0
        %389 = vmatpush1.msra.mxu0 0.0
        %390 = vmatprep.subr.mxu0 0.0
        %391 = vmatpush1.msra.mxu0 0.0
        %392 = vmatprep.subr.mxu0 0.0
        %393 = vmatpush1.msra.mxu0 0.0
        %394 = vmatprep.subr.mxu0 0.0
        %395 = vmatpush1.msra.mxu0 0.0
        %396 = vmatprep.subr.mxu0 0.0
        %397 = vmatpush1.msra.mxu0 0.0
        %398 = vmatprep.subr.mxu0 0.0
        %399 = vmatpush1.msra.mxu0 0.0
        %400 = vmatprep.subr.mxu0 0.0
        %401 = vmatpush1.msra.mxu0 0.0
        %402 = vmatprep.subr.mxu0 0.0
        %403 = vmatpush1.msra.mxu0 0.0
        %404 = vmatprep.subr.mxu0 0.0
        %405 = vmatpush1.msra.mxu0 0.0
        %406 = vmatprep.subr.mxu0 0.0
        %407 = vmatpush1.msra.mxu0 0.0
        %408 = vmatprep.subr.mxu0 0.0
        %409 = vmatpush1.msra.mxu0 0.0
        %410 = vmatprep.subr.mxu0 0.0
        %411 = vmatpush1.msra.mxu0 0.0
        %412 = vmatprep.subr.mxu0 0.0
        %413 = vmatpush1.msra.mxu0 0.0
        %414 = vmatprep.subr.mxu0 0.0
        %415 = vmatpush1.msra.mxu0 0.0
        %416 = vmatprep.subr.mxu0 0.0
        %417 = vmatpush1.msra.mxu0 0.0
        %418 = vmatprep.subr.mxu0 0.0
        %419 = vmatpush1.msra.mxu0 0.0
        %420 = vmatprep.subr.mxu0 0.0
        %421 = vmatpush1.msra.mxu0 0.0
        %422 = vmatprep.subr.mxu0 0.0
        %423 = vmatpush1.msra.mxu0 0.0
        %424 = vmatprep.mubr.f32.mxu0 0.0
        %425 = vmatmul.mubr.f32.gmra.mrb[0].mxu0 %v313
        %v426 = vpop.f32.mrb[0].mxu0
        %v427 = vadd.f32 0.0, %v426
        %v428 = vpop.f32.mrb[0].mxu0
        %v429 = vadd.f32 0.0, %v428
        %430 = vmatprep.mubr.f32.mxu0 0.0
        %431 = vmatmul.mubr.f32.gmra.mrb[0].mxu0 %v316
        %v432 = vpop.f32.mrb[0].mxu0
        %v433 = vadd.f32 0.0, %v432
        %v434 = vpop.f32.mrb[0].mxu0
        %v435 = vadd.f32 0.0, %v434
        %436 = vmatprep.mubr.f32.mxu0 0.0
        %437 = vmatmul.mubr.f32.gmra.mrb[0].mxu0 %v319
        %v438 = vpop.f32.mrb[0].mxu0
        %v439 = vadd.f32 0.0, %v438
        %v440 = vpop.f32.mrb[0].mxu0
        %v441 = vadd.f32 0.0, %v440
        %442 = vmatprep.mubr.f32.mxu0 0.0
        %443 = vmatmul.mubr.f32.gmra.mrb[0].mxu0 %v322
        %v444 = vpop.f32.mrb[0].mxu0
        %v445 = vadd.f32 0.0, %v444
        %v446 = vpop.f32.mrb[0].mxu0
        %v447 = vadd.f32 0.0, %v446
        %448 = vmatprep.mubr.f32.mxu0 0.0
        %449 = vmatmul.mubr.f32.gmra.mrb[0].mxu0 %v325
        %v450 = vpop.f32.mrb[0].mxu0
        %v451 = vadd.f32 0.0, %v450
        %v452 = vpop.f32.mrb[0].mxu0
        %v453 = vadd.f32 0.0, %v452
        %454 = vmatprep.mubr.f32.mxu0 0.0
        %455 = vmatmul.mubr.f32.gmra.mrb[0].mxu0 %v328
        %v456 = vpop.f32.mrb[0].mxu0
        %v457 = vadd.f32 0.0, %v456
        %v458 = vpop.f32.mrb[0].mxu0
        %v459 = vadd.f32 0.0, %v458
        %460 = vmatprep.mubr.f32.mxu0 0.0
        %461 = vmatmul.mubr.f32.gmra.mrb[0].mxu0 %v331
        %v462 = vpop.f32.mrb[0].mxu0
        %v463 = vadd.f32 0.0, %v462
        %v464 = vpop.f32.mrb[0].mxu0
        %v465 = vadd.f32 0.0, %v464
        %466 = vmatprep.mubr.f32.mxu0 0.0
        %467 = vmatmul.mubr.f32.gmra.mrb[0].mxu0 %v334
        %v468 = vpop.f32.mrb[0].mxu0
        %v469 = vadd.f32 0.0, %v468
        %v470 = vpop.f32.mrb[0].mxu0
        %v471 = vadd.f32 0.0, %v470
        %472 = vmatprep.mubr.f32.mxu0 0.0
        %473 = vmatmul.mubr.f32.gmra.mrb[0].mxu0 %v337
        %v474 = vpop.f32.mrb[0].mxu0
        %v475 = vadd.f32 0.0, %v474
        %v476 = vpop.f32.mrb[0].mxu0
        %v477 = vadd.f32 0.0, %v476
        %478 = vmatprep.mubr.f32.mxu0 0.0
        %479 = vmatmul.mubr.f32.gmra.mrb[0].mxu0 %v340
        %v480 = vpop.f32.mrb[0].mxu0
        %v481 = vadd.f32 0.0, %v480
        %v482 = vpop.f32.mrb[0].mxu0
        %v483 = vadd.f32 0.0, %v482
        %484 = vmatprep.mubr.f32.mxu0 0.0
        %485 = vmatmul.mubr.f32.gmra.mrb[0].mxu0 %v343
        %v486 = vpop.f32.mrb[0].mxu0
        %v487 = vadd.f32 0.0, %v486
        %v488 = vpop.f32.mrb[0].mxu0
        %v489 = vadd.f32 0.0, %v488
        %490 = vmatprep.mubr.f32.mxu0 0.0
        %491 = vmatmul.mubr.f32.gmra.mrb[0].mxu0 %v346
        %v492 = vpop.f32.mrb[0].mxu0
        %v493 = vadd.f32 0.0, %v492
        %v494 = vpop.f32.mrb[0].mxu0
        %v495 = vadd.f32 0.0, %v494
        %496 = vmatprep.mubr.f32.mxu0 0.0
        %497 = vmatmul.mubr.f32.gmra.mrb[0].mxu0 %v349
        %v498 = vpop.f32.mrb[0].mxu0
        %v499 = vadd.f32 0.0, %v498
        %v500 = vpop.f32.mrb[0].mxu0
        %v501 = vadd.f32 0.0, %v500
        %502 = vmatprep.mubr.f32.mxu0 0.0
        %503 = vmatmul.mubr.f32.gmra.mrb[0].mxu0 %v352
        %v504 = vpop.f32.mrb[0].mxu0
        %v505 = vadd.f32 0.0, %v504
        %v506 = vpop.f32.mrb[0].mxu0
        %v507 = vadd.f32 0.0, %v506
        %508 = vmatprep.mubr.f32.mxu0 0.0
        %509 = vmatmul.mubr.f32.gmra.mrb[0].mxu0 %v355
        %v510 = vpop.f32.mrb[0].mxu0
        %v511 = vadd.f32 0.0, %v510
        %v512 = vpop.f32.mrb[0].mxu0
        %v513 = vadd.f32 0.0, %v512
        %514 = vmatprep.mubr.f32.mxu0 0.0
        %515 = vmatmul.mubr.f32.gmra.mrb[0].mxu0 %v358
        %v516 = vpop.f32.mrb[0].mxu0
        %v517 = vadd.f32 0.0, %v516
        %v518 = vpop.f32.mrb[0].mxu0
        %v519 = vadd.f32 0.0, %v518
        %520 = vdwg.mxu0
        %v521 = vmin.f32 %v427, %v439
        %v522 = vmin.f32 %v433, %v445
        %v523 = vmin.f32 %v521, %v451
        %v524 = vmin.f32 %v522, %v457
        %v525 = vmin.f32 %v523, %v463
        %v526 = vmin.f32 %v524, %v469
        %v527 = vmin.f32 %v525, %v475
        %v528 = vmin.f32 %v526, %v481
        %v529 = vmin.f32 %v527, %v487
        %v530 = vmin.f32 %v528, %v493
        %v531 = vmin.f32 %v529, %v499
        %v532 = vmin.f32 %v530, %v505
        %v533 = vmin.f32 %v531, %v511
        %v534 = vmin.f32 %v532, %v517
        %v535 = vmin.f32 %v533, %v534
        %v536 = vrot.slane %v535, 4
        %v537 = vmin.f32 %v535, %v536
        %v538 = vrot.slane %v537, 2
        %v539 = vmin.f32 %v537, %v538
        %v540 = vrot.slane %v539, 1
        %v541 = vmin.f32 %v539, %v540
        %v542 = vmin.f32 %v429, %v441
        %v543 = vmin.f32 %v435, %v447
        %v544 = vmin.f32 %v542, %v453
        %v545 = vmin.f32 %v543, %v459
        %v546 = vmin.f32 %v544, %v465
        %v547 = vmin.f32 %v545, %v471
        %v548 = vmin.f32 %v546, %v477
        %v549 = vmin.f32 %v547, %v483
        %v550 = vmin.f32 %v548, %v489
        %v551 = vmin.f32 %v549, %v495
        %v552 = vmin.f32 %v550, %v501
        %v553 = vmin.f32 %v551, %v507
        %v554 = vmin.f32 %v552, %v513
        %v555 = vmin.f32 %v553, %v519
        %v556 = vmin.f32 %v554, %v555
        %v557 = vrot.slane %v556, 4
        %v558 = vmin.f32 %v556, %v557
        %v559 = vrot.slane %v558, 2
        %v560 = vmin.f32 %v558, %v559
        %v561 = vrot.slane %v560, 1
        %v562 = vmin.f32 %v560, %v561
        %v563 = vadd.s32 %v307, 8
        %v564 = vadd.s32 %v307, 16
        %v565 = vadd.s32 %v307, 24
        %v566 = vadd.s32 %v307, 32
        %v567 = vadd.s32 %v307, 40
        %v568 = vadd.s32 %v307, 48
        %v569 = vadd.s32 %v307, 56
        %v570 = vadd.s32 %v307, 64
        %v571 = vadd.s32 %v307, 72
        %v572 = vadd.s32 %v307, 80
        %v573 = vadd.s32 %v307, 88
        %v574 = vadd.s32 %v307, 96
        %v575 = vadd.s32 %v307, 104
        %v576 = vadd.s32 %v307, 112
        %v577 = vadd.s32 %v307, 120
        %vm578 = vcmp.eq.f32.partialorder %v427, %v541
        %vm579 = vcmp.eq.f32.partialorder %v429, %v562
        %vm580 = vcmp.eq.f32.partialorder %v433, %v541
        %vm581 = vcmp.eq.f32.partialorder %v435, %v562
        %vm582 = vcmp.eq.f32.partialorder %v439, %v541
        %vm583 = vcmp.eq.f32.partialorder %v441, %v562
        %vm584 = vcmp.eq.f32.partialorder %v445, %v541
        %vm585 = vcmp.eq.f32.partialorder %v447, %v562
        %vm586 = vcmp.eq.f32.partialorder %v451, %v541
        %vm587 = vcmp.eq.f32.partialorder %v453, %v562
        %vm588 = vcmp.eq.f32.partialorder %v457, %v541
        %vm589 = vcmp.eq.f32.partialorder %v459, %v562
        %vm590 = vcmp.eq.f32.partialorder %v463, %v541
        %vm591 = vcmp.eq.f32.partialorder %v465, %v562
        %vm592 = vcmp.eq.f32.partialorder %v469, %v541
        %vm593 = vcmp.eq.f32.partialorder %v471, %v562
        %vm594 = vcmp.eq.f32.partialorder %v475, %v541
        %vm595 = vcmp.eq.f32.partialorder %v477, %v562
        %vm596 = vcmp.eq.f32.partialorder %v481, %v541
        %vm597 = vcmp.eq.f32.partialorder %v483, %v562
        %vm598 = vcmp.eq.f32.partialorder %v487, %v541
        %vm599 = vcmp.eq.f32.partialorder %v489, %v562
        %vm600 = vcmp.eq.f32.partialorder %v493, %v541
        %vm601 = vcmp.eq.f32.partialorder %v495, %v562
        %vm602 = vcmp.eq.f32.partialorder %v499, %v541
        %vm603 = vcmp.eq.f32.partialorder %v501, %v562
        %vm604 = vcmp.eq.f32.partialorder %v505, %v541
        %vm605 = vcmp.eq.f32.partialorder %v507, %v562
        %vm606 = vcmp.eq.f32.partialorder %v511, %v541
        %vm607 = vcmp.eq.f32.partialorder %v513, %v562
        %vm608 = vcmp.eq.f32.partialorder %v517, %v541
        %vm609 = vcmp.eq.f32.partialorder %v519, %v562
        %v610 = vsel %vm578, %v307, 128
        %v611 = vsel %vm579, %v307, 128
        %v612 = vsel %vm580, %v563, 128
        %v613 = vsel %vm581, %v563, 128
        %v614 = vsel %vm582, %v564, 128
        %v615 = vsel %vm583, %v564, 128
        %v616 = vsel %vm584, %v565, 128
        %v617 = vsel %vm585, %v565, 128
        %v618 = vsel %vm586, %v566, 128
        %v619 = vsel %vm587, %v566, 128
        %v620 = vsel %vm588, %v567, 128
        %v621 = vsel %vm589, %v567, 128
        %v622 = vsel %vm590, %v568, 128
        %v623 = vsel %vm591, %v568, 128
        %v624 = vsel %vm592, %v569, 128
        %v625 = vsel %vm593, %v569, 128
        %v626 = vsel %vm594, %v570, 128
        %v627 = vsel %vm595, %v570, 128
        %v628 = vsel %vm596, %v571, 128
        %v629 = vsel %vm597, %v571, 128
        %v630 = vsel %vm598, %v572, 128
        %v631 = vsel %vm599, %v572, 128
        %v632 = vsel %vm600, %v573, 128
        %v633 = vsel %vm601, %v573, 128
        %v634 = vsel %vm602, %v574, 128
        %v635 = vsel %vm603, %v574, 128
        %v636 = vsel %vm604, %v575, 128
        %v637 = vsel %vm605, %v575, 128
        %v638 = vsel %vm606, %v576, 128
        %v639 = vsel %vm607, %v576, 128
        %v640 = vsel %vm608, %v577, 128
        %v641 = vsel %vm609, %v577, 128
        %vm642 = vcmp.lt.s32.totalorder %v610, %v614
        %v643 = vsel %vm642, %v610, %v614
        %vm644 = vcmp.lt.s32.totalorder %v612, %v616
        %v645 = vsel %vm644, %v612, %v616
        %vm646 = vcmp.lt.s32.totalorder %v643, %v618
        %v647 = vsel %vm646, %v643, %v618
        %vm648 = vcmp.lt.s32.totalorder %v645, %v620
        %v649 = vsel %vm648, %v645, %v620
        %vm650 = vcmp.lt.s32.totalorder %v647, %v622
        %v651 = vsel %vm650, %v647, %v622
        %vm652 = vcmp.lt.s32.totalorder %v649, %v624
        %v653 = vsel %vm652, %v649, %v624
        %vm654 = vcmp.lt.s32.totalorder %v651, %v626
        %v655 = vsel %vm654, %v651, %v626
        %vm656 = vcmp.lt.s32.totalorder %v653, %v628
        %v657 = vsel %vm656, %v653, %v628
        %vm658 = vcmp.lt.s32.totalorder %v655, %v630
        %v659 = vsel %vm658, %v655, %v630
        %vm660 = vcmp.lt.s32.totalorder %v657, %v632
        %v661 = vsel %vm660, %v657, %v632
        %vm662 = vcmp.lt.s32.totalorder %v659, %v634
        %v663 = vsel %vm662, %v659, %v634
        %vm664 = vcmp.lt.s32.totalorder %v661, %v636
        %v665 = vsel %vm664, %v661, %v636
        %vm666 = vcmp.lt.s32.totalorder %v663, %v638
        %v667 = vsel %vm666, %v663, %v638
        %vm668 = vcmp.lt.s32.totalorder %v665, %v640
        %v669 = vsel %vm668, %v665, %v640
        %vm670 = vcmp.lt.s32.totalorder %v667, %v669
        %v671 = vsel %vm670, %v667, %v669
        %v672 = vrot.slane %v671, 4
        %vm673 = vcmp.lt.s32.totalorder %v671, %v672
        %v674 = vsel %vm673, %v671, %v672
        %v675 = vrot.slane %v674, 2
        %vm676 = vcmp.lt.s32.totalorder %v674, %v675
        %v677 = vsel %vm676, %v674, %v675
        %v678 = vrot.slane %v677, 1
        %vm679 = vcmp.lt.s32.totalorder %v677, %v678
        %v680 = vsel %vm679, %v677, %v678
        %vm681 = vcmp.lt.s32.totalorder %v611, %v615
        %v682 = vsel %vm681, %v611, %v615
        %vm683 = vcmp.lt.s32.totalorder %v613, %v617
        %v684 = vsel %vm683, %v613, %v617
        %vm685 = vcmp.lt.s32.totalorder %v682, %v619
        %v686 = vsel %vm685, %v682, %v619
        %vm687 = vcmp.lt.s32.totalorder %v684, %v621
        %v688 = vsel %vm687, %v684, %v621
        %vm689 = vcmp.lt.s32.totalorder %v686, %v623
        %v690 = vsel %vm689, %v686, %v623
        %vm691 = vcmp.lt.s32.totalorder %v688, %v625
        %v692 = vsel %vm691, %v688, %v625
        %vm693 = vcmp.lt.s32.totalorder %v690, %v627
        %v694 = vsel %vm693, %v690, %v627
        %vm695 = vcmp.lt.s32.totalorder %v692, %v629
        %v696 = vsel %vm695, %v692, %v629
        %vm697 = vcmp.lt.s32.totalorder %v694, %v631
        %v698 = vsel %vm697, %v694, %v631
        %vm699 = vcmp.lt.s32.totalorder %v696, %v633
        %v700 = vsel %vm699, %v696, %v633
        %vm701 = vcmp.lt.s32.totalorder %v698, %v635
        %v702 = vsel %vm701, %v698, %v635
        %vm703 = vcmp.lt.s32.totalorder %v700, %v637
        %v704 = vsel %vm703, %v700, %v637
        %vm705 = vcmp.lt.s32.totalorder %v702, %v639
        %v706 = vsel %vm705, %v702, %v639
        %vm707 = vcmp.lt.s32.totalorder %v704, %v641
        %v708 = vsel %vm707, %v704, %v641
        %vm709 = vcmp.lt.s32.totalorder %v706, %v708
        %v710 = vsel %vm709, %v706, %v708
        %v711 = vrot.slane %v710, 4
        %vm712 = vcmp.lt.s32.totalorder %v710, %v711
        %v713 = vsel %vm712, %v710, %v711
        %v714 = vrot.slane %v713, 2
        %vm715 = vcmp.lt.s32.totalorder %v713, %v714
        %v716 = vsel %vm715, %v713, %v714
        %v717 = vrot.slane %v716, 1
        %vm718 = vcmp.lt.s32.totalorder %v716, %v717
        %v719 = vsel %vm718, %v716, %v717
        %v720 = vcombine.low %v680, %v719
        %v722 = vunpack.c.l.s4 1966171168
        %v723 = vunpack.c.0.s8 %v722
        %v724 = vlaneseq
        %v725 = vshrl.u32 %v724, 7
        %v726 = vsub.s32 %v723, %v725
        %v727 = vrot.slane %v720, %v726
        %v729 = vunpack.c.l.s4 1966171168
        %v730 = vunpack.c.0.s8 %v729
        %v731 = vlaneseq
        %v732 = vshrl.u32 %v731, 7
        %v733 = vsub.s32 %v730, %v732
        %v734 = vrot.slane %v727, %v733
        %v735 = vlaneseq
        %vm736 = vcmp.ge.s32.totalorder %v735, 0
        %vm737 = vcmp.lt.s32.totalorder %v735, 256
        %vm738 = vmand %vm736, %vm737
        %739 = vst.msk [vmem:[%s257] sm:$0x3] %vm738, %v734
        %vm740 = vcmp.eq.s32.totalorder %v307, %v680
        %vm741 = vcmp.eq.s32.totalorder %v307, %v719
        %vm742 = vcmp.eq.s32.totalorder %v563, %v680
        %vm743 = vcmp.eq.s32.totalorder %v563, %v719
        %vm744 = vcmp.eq.s32.totalorder %v564, %v680
        %vm745 = vcmp.eq.s32.totalorder %v564, %v719
        %vm746 = vcmp.eq.s32.totalorder %v565, %v680
        %vm747 = vcmp.eq.s32.totalorder %v565, %v719
        %vm748 = vcmp.eq.s32.totalorder %v566, %v680
        %vm749 = vcmp.eq.s32.totalorder %v566, %v719
        %vm750 = vcmp.eq.s32.totalorder %v567, %v680
        %vm751 = vcmp.eq.s32.totalorder %v567, %v719
        %vm752 = vcmp.eq.s32.totalorder %v568, %v680
        %vm753 = vcmp.eq.s32.totalorder %v568, %v719
        %vm754 = vcmp.eq.s32.totalorder %v569, %v680
        %vm755 = vcmp.eq.s32.totalorder %v569, %v719
        %vm756 = vcmp.eq.s32.totalorder %v570, %v680
        %vm757 = vcmp.eq.s32.totalorder %v570, %v719
        %vm758 = vcmp.eq.s32.totalorder %v571, %v680
        %vm759 = vcmp.eq.s32.totalorder %v571, %v719
        %vm760 = vcmp.eq.s32.totalorder %v572, %v680
        %vm761 = vcmp.eq.s32.totalorder %v572, %v719
        %vm762 = vcmp.eq.s32.totalorder %v573, %v680
        %vm763 = vcmp.eq.s32.totalorder %v573, %v719
        %vm764 = vcmp.eq.s32.totalorder %v574, %v680
        %vm765 = vcmp.eq.s32.totalorder %v574, %v719
        %vm766 = vcmp.eq.s32.totalorder %v575, %v680
        %vm767 = vcmp.eq.s32.totalorder %v575, %v719
        %vm768 = vcmp.eq.s32.totalorder %v576, %v680
        %vm769 = vcmp.eq.s32.totalorder %v576, %v719
        %vm770 = vcmp.eq.s32.totalorder %v577, %v680
        %vm771 = vcmp.eq.s32.totalorder %v577, %v719
        %v772 = vsel %vm740, 1, 0
        %v773 = vsel %vm741, 1, 0
        %v774 = vsel %vm742, 1, 0
        %v775 = vsel %vm743, 1, 0
        %v776 = vsel %vm744, 1, 0
        %v777 = vsel %vm745, 1, 0
        %v778 = vsel %vm746, 1, 0
        %v779 = vsel %vm747, 1, 0
        %v780 = vsel %vm748, 1, 0
        %v781 = vsel %vm749, 1, 0
        %v782 = vsel %vm750, 1, 0
        %v783 = vsel %vm751, 1, 0
        %v784 = vsel %vm752, 1, 0
        %v785 = vsel %vm753, 1, 0
        %v786 = vsel %vm754, 1, 0
        %v787 = vsel %vm755, 1, 0
        %v788 = vsel %vm756, 1, 0
        %v789 = vsel %vm757, 1, 0
        %v790 = vsel %vm758, 1, 0
        %v791 = vsel %vm759, 1, 0
        %v792 = vsel %vm760, 1, 0
        %v793 = vsel %vm761, 1, 0
        %v794 = vsel %vm762, 1, 0
        %v795 = vsel %vm763, 1, 0
        %v796 = vsel %vm764, 1, 0
        %v797 = vsel %vm765, 1, 0
        %v798 = vsel %vm766, 1, 0
        %v799 = vsel %vm767, 1, 0
        %v800 = vsel %vm768, 1, 0
        %v801 = vsel %vm769, 1, 0
        %v802 = vsel %vm770, 1, 0
        %v803 = vsel %vm771, 1, 0
        %v804 = vcvt.s32.f32 %v772
        %v805 = vcvt.s32.f32 %v773
        %v806 = vcvt.s32.f32 %v774
        %v807 = vcvt.s32.f32 %v775
        %v808 = vcvt.s32.f32 %v776
        %v809 = vcvt.s32.f32 %v777
        %v810 = vcvt.s32.f32 %v778
        %v811 = vcvt.s32.f32 %v779
        %v812 = vcvt.s32.f32 %v780
        %v813 = vcvt.s32.f32 %v781
        %v814 = vcvt.s32.f32 %v782
        %v815 = vcvt.s32.f32 %v783
        %v816 = vcvt.s32.f32 %v784
        %v817 = vcvt.s32.f32 %v785
        %v818 = vcvt.s32.f32 %v786
        %v819 = vcvt.s32.f32 %v787
        %v820 = vcvt.s32.f32 %v788
        %v821 = vcvt.s32.f32 %v789
        %v822 = vcvt.s32.f32 %v790
        %v823 = vcvt.s32.f32 %v791
        %v824 = vcvt.s32.f32 %v792
        %v825 = vcvt.s32.f32 %v793
        %v826 = vcvt.s32.f32 %v794
        %v827 = vcvt.s32.f32 %v795
        %v828 = vcvt.s32.f32 %v796
        %v829 = vcvt.s32.f32 %v797
        %v830 = vcvt.s32.f32 %v798
        %v831 = vcvt.s32.f32 %v799
        %v832 = vcvt.s32.f32 %v800
        %v833 = vcvt.s32.f32 %v801
        %v834 = vcvt.s32.f32 %v802
        %v835 = vcvt.s32.f32 %v803
        %836 = vmatprep.subr.mxu0 %v805
        %837 = vmatpush1.msra.mxu0 %v804
        %838 = vmatprep.subr.mxu0 %v807
        %839 = vmatpush1.msra.mxu0 %v806
        %840 = vmatprep.subr.mxu0 %v809
        %841 = vmatpush1.msra.mxu0 %v808
        %842 = vmatprep.subr.mxu0 %v811
        %843 = vmatpush1.msra.mxu0 %v810
        %844 = vmatprep.subr.mxu0 %v813
        %845 = vmatpush1.msra.mxu0 %v812
        %846 = vmatprep.subr.mxu0 %v815
        %847 = vmatpush1.msra.mxu0 %v814
        %848 = vmatprep.subr.mxu0 %v817
        %849 = vmatpush1.msra.mxu0 %v816
        %850 = vmatprep.subr.mxu0 %v819
        %851 = vmatpush1.msra.mxu0 %v818
        %852 = vmatprep.subr.mxu0 %v821
        %853 = vmatpush1.msra.mxu0 %v820
        %854 = vmatprep.subr.mxu0 %v823
        %855 = vmatpush1.msra.mxu0 %v822
        %856 = vmatprep.subr.mxu0 %v825
        %857 = vmatpush1.msra.mxu0 %v824
        %858 = vmatprep.subr.mxu0 %v827
        %859 = vmatpush1.msra.mxu0 %v826
        %860 = vmatprep.subr.mxu0 %v829
        %861 = vmatpush1.msra.mxu0 %v828
        %862 = vmatprep.subr.mxu0 %v831
        %863 = vmatpush1.msra.mxu0 %v830
        %864 = vmatprep.subr.mxu0 %v833
        %865 = vmatpush1.msra.mxu0 %v832
        %866 = vmatprep.subr.mxu0 %v835
        %867 = vmatpush1.msra.mxu0 %v834
        %868 = vmatprep.subr.mxu0 0.0
        %869 = vmatpush1.msra.mxu0 0.0
        %870 = vmatprep.subr.mxu0 0.0
        %871 = vmatpush1.msra.mxu0 0.0
        %872 = vmatprep.subr.mxu0 0.0
        %873 = vmatpush1.msra.mxu0 0.0
        %874 = vmatprep.subr.mxu0 0.0
        %875 = vmatpush1.msra.mxu0 0.0
        %876 = vmatprep.subr.mxu0 0.0
        %877 = vmatpush1.msra.mxu0 0.0
        %878 = vmatprep.subr.mxu0 0.0
        %879 = vmatpush1.msra.mxu0 0.0
        %880 = vmatprep.subr.mxu0 0.0
        %881 = vmatpush1.msra.mxu0 0.0
        %882 = vmatprep.subr.mxu0 0.0
        %883 = vmatpush1.msra.mxu0 0.0
        %884 = vmatprep.subr.mxu0 0.0
        %885 = vmatpush1.msra.mxu0 0.0
        %886 = vmatprep.subr.mxu0 0.0
        %887 = vmatpush1.msra.mxu0 0.0
        %888 = vmatprep.subr.mxu0 0.0
        %889 = vmatpush1.msra.mxu0 0.0
        %890 = vmatprep.subr.mxu0 0.0
        %891 = vmatpush1.msra.mxu0 0.0
        %892 = vmatprep.subr.mxu0 0.0
        %893 = vmatpush1.msra.mxu0 0.0
        %894 = vmatprep.subr.mxu0 0.0
        %895 = vmatpush1.msra.mxu0 0.0
        %896 = vmatprep.subr.mxu0 0.0
        %897 = vmatpush1.msra.mxu0 0.0
        %898 = vmatprep.subr.mxu0 0.0
        %899 = vmatpush1.msra.mxu0 0.0
        %900 = vmatprep.mubr.f32.mxu0 0.0
        %901 = vmatmul.mubr.f32.gmra.mrb[0].mxu0 %v302
        %v902 = vpop.f32.mrb[0].mxu0
        %v903 = vadd.f32 0.0, %v902
        %v904 = vpop.f32.mrb[0].mxu0
        %v905 = vadd.f32 0.0, %v904
        %906 = vmatprep.mubr.f32.mxu0 0.0
        %907 = vmatmul.mubr.f32.gmra.mrb[0].mxu0 %v303
        %v908 = vpop.f32.mrb[0].mxu0
        %v909 = vadd.f32 0.0, %v908
        %v910 = vpop.f32.mrb[0].mxu0
        %v911 = vadd.f32 0.0, %v910
        %912 = vmatprep.mubr.f32.mxu0 0.0
        %913 = vmatmul.mubr.f32.gmra.mrb[0].mxu0 %v304
        %v914 = vpop.f32.mrb[0].mxu0
        %v915 = vadd.f32 0.0, %v914
        %v916 = vpop.f32.mrb[0].mxu0
        %v917 = vadd.f32 0.0, %v916
        %918 = vmatprep.mubr.f32.mxu0 0.0
        %919 = vmatmul.mubr.f32.gmra.mrb[0].mxu0 %v305
        %v920 = vpop.f32.mrb[0].mxu0
        %v921 = vadd.f32 0.0, %v920
        %v922 = vpop.f32.mrb[0].mxu0
        %v923 = vadd.f32 0.0, %v922
        %924 = vdwg.mxu0
        %925 = vst [vmem:[%s250] sm:$0xff] %v903
        %926 = vst [vmem:[%s250 + $0x8] sm:$0xff] %v905
        %927 = vst [vmem:[%s250 + $0x10] sm:$0xff] %v909
        %928 = vst [vmem:[%s250 + $0x18] sm:$0xff] %v911
        %929 = vst [vmem:[%s250 + $0x20] sm:$0xff] %v915
        %930 = vst [vmem:[%s250 + $0x28] sm:$0xff] %v917
        %931 = vst [vmem:[%s250 + $0x30] sm:$0xff] %v921
        %932 = vst [vmem:[%s250 + $0x38] sm:$0xff] %v923
        %v933 = vmul.f32 %v278, %v278
        %v934 = vmul.f32 %v279, %v279
        %v935 = vmul.f32 %v280, %v280
        %v936 = vmul.f32 %v281, %v281
        %v937 = vmul.f32 %v282, %v282
        %v938 = vmul.f32 %v283, %v283
        %v939 = vmul.f32 %v284, %v284
        %v940 = vmul.f32 %v285, %v285
        %v941 = vadd.f32 %v933, %v935
        %v942 = vadd.f32 %v941, %v937
        %v943 = vadd.f32 %v942, %v939
        %v944 = vrot.slane %v943, 4
        %v945 = vadd.f32 %v943, %v944
        %v946 = vrot.slane %v945, 2
        %v947 = vadd.f32 %v945, %v946
        %v948 = vrot.slane %v947, 1
        %v949 = vadd.f32 %v947, %v948
        %v950 = vadd.f32 %v934, %v936
        %v951 = vadd.f32 %v950, %v938
        %v952 = vadd.f32 %v951, %v940
        %v953 = vrot.slane %v952, 4
        %v954 = vadd.f32 %v952, %v953
        %v955 = vrot.slane %v954, 2
        %v956 = vadd.f32 %v954, %v955
        %v957 = vrot.slane %v956, 1
        %v958 = vadd.f32 %v956, %v957
        %v959 = vmul.f32 %v541, 2.0
        %v960 = vmul.f32 %v562, 2.0
        %v961 = vadd.f32 %v949, %v959
        %v962 = vadd.f32 %v958, %v960
        %v965 = vcombine.low %v961, %v962
        %v967 = vunpack.c.l.s4 1966171168
        %v968 = vunpack.c.0.s8 %v967
        %v969 = vlaneseq
        %v970 = vshrl.u32 %v969, 7
        %v971 = vsub.s32 %v968, %v970
        %v972 = vrot.slane %v965, %v971
        %v974 = vunpack.c.l.s4 1966171168
        %v975 = vunpack.c.0.s8 %v974
        %v976 = vlaneseq
        %v977 = vshrl.u32 %v976, 7
        %v978 = vsub.s32 %v975, %v977
        %v979 = vrot.slane %v972, %v978
        %981 = vst.msk [vmem:[%s264] sm:$0x3] %vm738, %v979
        %s982 = sand.u32 %s115, 1
        %s983 = scalar_lea.sflag [#allocation3], %s982
        %s984 = sand.u32 %s115, 1
        %s985 = smul.addr %s984, 64
        %s986 = scalar_lea.vmem [#allocation2], %s985
        %s987 = sand.u32 %s23, 1
        %s988 = scalar_lea.sflag [#allocation5], %s987
        %s989 = sand.u32 %s143, 1
        %s990 = smul.addr %s989, 2
        %s991 = scalar_lea.vmem [#allocation4], %s990
        %s992 = sand.u32 %s23, 1
        %s993 = scalar_lea.sflag [#allocation5], %s992
        %s994 = sand.u32 %s171, 1
        %s995 = smul.addr %s994, 2
        %s996 = scalar_lea.vmem [#allocation6], %s995
        // Predicated region
        $region33: #{tpu_custom_call.1} parent=31 // pred_check
          %p997 = pneg %p125
        $region34: #{tpu_custom_call.1} parent=31 // pred_check_branch
          %999 = sbr.rel (%p997) target = $region36
        $region35: #{tpu_custom_call.1} parent=31 // pred_region
          %s1000 = smul.u32 2, %s28
          %s1002 = ssub.s32 1024, 1024
          %1003 = vsyncadd %s983, %s1002
          %s1004 = smul.addr %s27, 8
          %s1005 = sadd.s32 %s1000, %s1004
          %s1006 = smul.addr %s1005, 128
          %s1007 = scalar_lea.hbm %s3, %s1006
          %s1008 = sshll.u32 %s986, 4
          %s1009 = int_to_ptr.vmem [resolvable:$true] %s1008
          %1014 = dma.vmem_to_hbm [thread:$0]  %s1009, 1024, %s1007, %s983, 256, 256, 16
        $region36: #{tpu_custom_call.1} parent=31 // pred_fallthru
          _
        // Predicated region
        $region37: #{tpu_custom_call.1} parent=31 // pred_check
          %p1015 = pneg %p153
        $region38: #{tpu_custom_call.1} parent=31 // pred_check_branch
          %1017 = sbr.rel (%p1015) target = $region40
        $region39: #{tpu_custom_call.1} parent=31 // pred_region
          %s1018 = smul.u32 2, %s28
          %s1020 = ssub.s32 32, 32
          %1021 = vsyncadd %s988, %s1020
          %s1022 = smul.addr %s27, 2
          %s1023 = sadd.s32 %s1018, %s1022
          %s1024 = smul.addr %s1023, 16
          %s1025 = scalar_lea.hbm %s4, %s1024
          %s1027 = sshll.u32 %s991, 4
          %s1028 = int_to_ptr.vmem [resolvable:$true] %s1027
          %1030 = dma.vmem_to_hbm [thread:$0]  %s1028, 32, %s1025, %s988
        $region40: #{tpu_custom_call.1} parent=31 // pred_fallthru
          _
        // Predicated region
        $region41: #{tpu_custom_call.1} parent=31 // pred_check
          %p1031 = pneg %p181
        $region42: #{tpu_custom_call.1} parent=31 // pred_check_branch
          %1033 = sbr.rel (%p1031) target = $region44
        $region43: #{tpu_custom_call.1} parent=31 // pred_region
          %s1034 = smul.u32 2, %s28
          %s1036 = ssub.s32 32, 32
          %1037 = vsyncadd %s993, %s1036
          %s1038 = smul.addr %s27, 2
          %s1039 = sadd.s32 %s1034, %s1038
          %s1040 = smul.addr %s1039, 16
          %s1041 = scalar_lea.hbm %s5, %s1040
          %s1043 = sshll.u32 %s996, 4
          %s1044 = int_to_ptr.vmem [resolvable:$true] %s1043
          %1046 = dma.vmem_to_hbm [thread:$0]  %s1044, 32, %s1041, %s993
        $region44: #{tpu_custom_call.1} parent=31 // pred_fallthru
          _
      $region32: #{tpu_custom_call.1} parent=5 // pred_fallthru
        _
      %p1047 = scmp.le.s32.totalorder 2, %s18
      // Predicated region
      $region45: #{tpu_custom_call.1} parent=5 // pred_check
        %p1048 = pneg %p1047
      $region46: #{tpu_custom_call.1} parent=5 // pred_check_branch
        %1050 = sbr.rel (%p1048) target = $region48
      $region47: #{tpu_custom_call.1} parent=5 // pred_region
        %s1051 = ssub.s32 %s18, 2
        // Predicated region
        $region49: #{tpu_custom_call.1} parent=47 // pred_check
          %p1052 = pneg %p131
        $region50: #{tpu_custom_call.1} parent=47 // pred_check_branch
          %1054 = sbr.rel (%p1052) target = $region52
        $region51: #{tpu_custom_call.1} parent=47 // pred_region
          %s1055 = sand.u32 %s116, 1
          %s1056 = scalar_lea.sflag [#allocation3], %s1055
          %s1057 = sand.u32 %s116, 1
          %s1058 = smul.addr %s1057, 64
          %s1059 = scalar_lea.vmem [#allocation2], %s1058
          %1060 = dma.done %s1056, 1024
        $region52: #{tpu_custom_call.1} parent=47 // pred_fallthru
          _
        // Predicated region
        $region53: #{tpu_custom_call.1} parent=47 // pred_check
          %p1061 = pneg %p159
        $region54: #{tpu_custom_call.1} parent=47 // pred_check_branch
          %1063 = sbr.rel (%p1061) target = $region56
        $region55: #{tpu_custom_call.1} parent=47 // pred_region
          %s1064 = sand.u32 %s24, 1
          %s1065 = scalar_lea.sflag [#allocation5], %s1064
          %s1066 = sand.u32 %s144, 1
          %s1067 = smul.addr %s1066, 2
          %s1068 = scalar_lea.vmem [#allocation4], %s1067
          %1069 = dma.done %s1065, 32
        $region56: #{tpu_custom_call.1} parent=47 // pred_fallthru
          _
        // Predicated region
        $region57: #{tpu_custom_call.1} parent=47 // pred_check
          %p1070 = pneg %p187
        $region58: #{tpu_custom_call.1} parent=47 // pred_check_branch
          %1072 = sbr.rel (%p1070) target = $region60
        $region59: #{tpu_custom_call.1} parent=47 // pred_region
          %s1073 = sand.u32 %s24, 1
          %s1074 = scalar_lea.sflag [#allocation5], %s1073
          %s1075 = sand.u32 %s172, 1
          %s1076 = smul.addr %s1075, 2
          %s1077 = scalar_lea.vmem [#allocation6], %s1076
          %1078 = dma.done %s1074, 32
        $region60: #{tpu_custom_call.1} parent=47 // pred_fallthru
          _
      $region48: #{tpu_custom_call.1} parent=5 // pred_fallthru
        _
    $region6: #{tpu_custom_call.1} parent=1 // loop_footer
      %s22 = sadd.s32 1, %s18
    $region7: #{tpu_custom_call.1} parent=1 // loop_footer_branch
      %17 = sbr.rel target = $region3
    $region8: #{tpu_custom_call.1} parent=1 // loop_exit
      _
    %1079 = vsyncpa [#allocation3], 1
    %s1080 = scalar_lea.sflag [#allocation3], 1
    %1081 = vsyncpa %s1080, 1
    %1082 = vsyncpa [#allocation5], 1
    %s1083 = scalar_lea.sflag [#allocation5], 1
    %1084 = vsyncpa %s1083, 1

</llo_original>
